<compile_context>
chip_gen: v7x
topology: tpu7x:2x2x1
jax: 0.10.0
libtpu: 0.0.40
codegen_flags: <defaults>
</compile_context>

<pallas_src>
import jax
import jax.numpy as jnp
import numpy as np
from jax.experimental import pallas as pl
from jax.experimental.pallas import tpu as pltpu

HIDDEN = 25
HPAD = 32  # hidden padded to a multiple of the 8-sublane group


def _mlp_bc_kernel(x_ref, w1_ref, b1_ref, w2_ref, b2_ref, w3_ref, o_ref):
    x = x_ref[...]                                        # (2, bn)   f32

    # Boundary factor: one EUP sin pass over both rows (lane-dense).
    s = jnp.sin(jnp.float32(np.pi) * x)                   # (2, bn)
    bc = s[0:1, :] * s[1:2, :]                            # (1, bn)

    # layer_1 + tanh — K=2 contraction on the VPU as two broadcast FMAs.
    w1 = w1_ref[...]                                       # (HPAD, 2)
    h = (w1[:, 0:1] * x[0:1, :]
         + w1[:, 1:2] * x[1:2, :]
         + b1_ref[...])                                    # (HPAD, bn)
    h = jnp.tanh(h)

    # layer_2 + tanh — MXU matmul with batch on the lane (output-N) axis.
    h = jnp.dot(w2_ref[...], h, preferred_element_type=jnp.float32)
    h = jnp.tanh(h + b2_ref[...])                          # (HPAD, bn)

    # output layer (32 -> 1, no bias): VPU sublane tree + small reduce,
    # fused with the boundary factor.
    t = h * w3_ref[...]                                    # (HPAD, bn)
    t = t[0:16, :] + t[16:32, :]                           # (16, bn)
    t = t[0:8, :] + t[8:16, :]                             # (8, bn)
    y = jnp.sum(t, axis=0, keepdims=True)                  # (1, bn)

    o_ref[...] = bc * y                                    # lane-dense store


def network_forward(x, padded_params, *, block_n=1280):
    """x: (N, 2) f32.  padded_params: transposed / zero-padded to HPAD."""
    w1_t, b1_c, w2_t, b2_c, w3_c = padded_params
    n = x.shape[0]
    n_pad = ((n + block_n - 1) // block_n) * block_n

    x_t = jnp.transpose(x)                                 # (2, N) layout plumbing
    if n_pad != n:
        x_t = jnp.pad(x_t, ((0, 0), (0, n_pad - n)))       # padded cols -> bc=0

    grid = (n_pad // block_n,)

    def full_spec(a):
        nd = a.ndim
        return pl.BlockSpec(a.shape, lambda i, _nd=nd: (0,) * _nd)

    out = pl.pallas_call(
        _mlp_bc_kernel,
        out_shape=jax.ShapeDtypeStruct((1, n_pad), jnp.float32),
        grid=grid,
        in_specs=[
            pl.BlockSpec((2, block_n), lambda i: (0, i)),
            full_spec(w1_t), full_spec(b1_c),
            full_spec(w2_t), full_spec(b2_c),
            full_spec(w3_c),
        ],
        out_specs=pl.BlockSpec((1, block_n), lambda i: (0, i)),
        compiler_params=pltpu.CompilerParams(
            dimension_semantics=("parallel",)),
    )(x_t, w1_t, b1_c, w2_t, b2_c, w3_c)

    return out[0, :n].reshape(n, 1)


def init_params(key, hidden=HIDDEN):
    """PyTorch nn.Linear-style init.  Weights stored (out_features, in_features)."""
    k1, k2, k3, k4, k5 = jax.random.split(key, 5)

    def uniform(k, shape, fan_in):
        bound = 1.0 / np.sqrt(fan_in)
        return jax.random.uniform(k, shape, jnp.float32, -bound, bound)

    W1 = uniform(k1, (hidden, 2), 2)
    b1 = uniform(k2, (hidden,), 2)
    W2 = uniform(k3, (hidden, hidden), hidden)
    b2 = uniform(k4, (hidden,), hidden)
    W3 = uniform(k5, (1, hidden), hidden)                  # output, bias=False
    return W1, b1, W2, b2, W3


def pad_params_for_kernel(params, hidden=HIDDEN, hpad=HPAD):
    """Zero-pad hidden to HPAD and lay out for the batch-on-lanes kernel."""
    W1, b1, W2, b2, W3 = params
    w1_t = jnp.zeros((hpad, 2), jnp.float32).at[:hidden].set(W1)
    b1_c = jnp.zeros((hpad, 1), jnp.float32).at[:hidden, 0].set(b1)
    w2_t = jnp.zeros((hpad, hpad), jnp.float32).at[:hidden, :hidden].set(W2)
    b2_c = jnp.zeros((hpad, 1), jnp.float32).at[:hidden, 0].set(b2)
    w3_c = jnp.zeros((hpad, 1), jnp.float32).at[:hidden, 0].set(W3[0])
    return w1_t, b1_c, w2_t, b2_c, w3_c


def reference_forward(x, params):
    """Pure-JAX reference matching the PyTorch forward."""
    W1, b1, W2, b2, W3 = params
    h = jnp.tanh(x @ W1.T + b1)
    h = jnp.tanh(h @ W2.T + b2)
    y = h @ W3.T                                           # (N, 1)
    bc = jnp.sin(np.pi * x[:, 0:1]) * jnp.sin(np.pi * x[:, 1:2])
    return bc * y


if __name__ == "__main__":
    key = jax.random.PRNGKey(0)

    # 50x50 collocation meshgrid on [0,1]^2 (pts = 50), as in the PINN spec:
    # 2500 points batched into one pallas_call (padded to 2560 -> 2 row blocks).
    pts = 50
    lin = jnp.linspace(0.0, 1.0, pts, dtype=jnp.float32)
    xx, yy = jnp.meshgrid(lin, lin, indexing="ij")
    x = jnp.stack([xx.ravel(), yy.ravel()], axis=-1)       # (2500, 2)

    params = init_params(key)
    padded = pad_params_for_kernel(params)

    out = network_forward(x, padded)
    out = jax.block_until_ready(out)

    ref = reference_forward(x, params)
    assert out.shape == (pts * pts, 1)
    np.testing.assert_allclose(np.asarray(out), np.asarray(ref),
                               rtol=1e-5, atol=1e-5)
    print("KERNEL_OK")
</pallas_src>

<mosaic_0001>
module attributes {stable_mosaic.version = 11 : i64} {
  func.func @_mlp_bc_kernel(%arg0: i32, %arg1: memref<2x1280xf32, #tpu.memory_space<vmem>>, %arg2: memref<32x2xf32, #tpu.memory_space<vmem>>, %arg3: memref<32x1xf32, #tpu.memory_space<vmem>>, %arg4: memref<32x32xf32, #tpu.memory_space<vmem>>, %arg5: memref<32x1xf32, #tpu.memory_space<vmem>>, %arg6: memref<32x1xf32, #tpu.memory_space<vmem>>, %arg7: memref<1x1280xf32, #tpu.memory_space<vmem>>) attributes {dimension_semantics = [#tpu.dimension_semantics<parallel>], iteration_bounds = array<i64: 2>, scalar_prefetch = 0 : i64, scratch_operands = 0 : i64, tpu.core_type = #tpu.core_type<tc>, window_params = [{transform_indices = @transform_0, window_bounds = array<i64: 2, 1280>}, {pipeline_mode = #tpu.pipeline_mode<synchronous>, transform_indices = @transform_1, window_bounds = array<i64: 32, 2>}, {pipeline_mode = #tpu.pipeline_mode<synchronous>, transform_indices = @transform_2, window_bounds = array<i64: 32, 1>}, {pipeline_mode = #tpu.pipeline_mode<synchronous>, transform_indices = @transform_3, window_bounds = array<i64: 32, 32>}, {pipeline_mode = #tpu.pipeline_mode<synchronous>, transform_indices = @transform_4, window_bounds = array<i64: 32, 1>}, {pipeline_mode = #tpu.pipeline_mode<synchronous>, transform_indices = @transform_5, window_bounds = array<i64: 32, 1>}, {transform_indices = @transform_6, window_bounds = array<i64: 1, 1280>}]} {
    %c0 = arith.constant 0 : index
    %c0_0 = arith.constant 0 : index
    %0 = vector.load %arg1[%c0, %c0_0] : memref<2x1280xf32, #tpu.memory_space<vmem>>, vector<2x1280xf32>
    %cst = arith.constant 3.14159274 : f32
    %1 = vector.broadcast %cst : f32 to vector<2x1280xf32>
    %2 = arith.mulf %1, %0 : vector<2x1280xf32>
    %3 = math.sin %2 : vector<2x1280xf32>
    %4 = vector.extract_strided_slice %3 {offsets = [0, 0], sizes = [1, 1280], strides = [1, 1]} : vector<2x1280xf32> to vector<1x1280xf32>
    %5 = vector.extract_strided_slice %3 {offsets = [1, 0], sizes = [1, 1280], strides = [1, 1]} : vector<2x1280xf32> to vector<1x1280xf32>
    %6 = arith.mulf %4, %5 : vector<1x1280xf32>
    %c0_1 = arith.constant 0 : index
    %c0_2 = arith.constant 0 : index
    %7 = vector.load %arg2[%c0_1, %c0_2] : memref<32x2xf32, #tpu.memory_space<vmem>>, vector<32x2xf32>
    %8 = vector.extract_strided_slice %7 {offsets = [0, 0], sizes = [32, 1], strides = [1, 1]} : vector<32x2xf32> to vector<32x1xf32>
    %9 = vector.extract_strided_slice %0 {offsets = [0, 0], sizes = [1, 1280], strides = [1, 1]} : vector<2x1280xf32> to vector<1x1280xf32>
    %10 = vector.broadcast %8 : vector<32x1xf32> to vector<32x1280xf32>
    %11 = vector.broadcast %9 : vector<1x1280xf32> to vector<32x1280xf32>
    %12 = arith.mulf %10, %11 : vector<32x1280xf32>
    %13 = vector.extract_strided_slice %7 {offsets = [0, 1], sizes = [32, 1], strides = [1, 1]} : vector<32x2xf32> to vector<32x1xf32>
    %14 = vector.extract_strided_slice %0 {offsets = [1, 0], sizes = [1, 1280], strides = [1, 1]} : vector<2x1280xf32> to vector<1x1280xf32>
    %15 = vector.broadcast %13 : vector<32x1xf32> to vector<32x1280xf32>
    %16 = vector.broadcast %14 : vector<1x1280xf32> to vector<32x1280xf32>
    %17 = arith.mulf %15, %16 : vector<32x1280xf32>
    %18 = arith.addf %12, %17 : vector<32x1280xf32>
    %c0_3 = arith.constant 0 : index
    %c0_4 = arith.constant 0 : index
    %19 = vector.load %arg3[%c0_3, %c0_4] : memref<32x1xf32, #tpu.memory_space<vmem>>, vector<32x1xf32>
    %20 = vector.broadcast %19 : vector<32x1xf32> to vector<32x1280xf32>
    %21 = arith.addf %18, %20 : vector<32x1280xf32>
    %22 = math.tanh %21 : vector<32x1280xf32>
    %c0_5 = arith.constant 0 : index
    %c0_6 = arith.constant 0 : index
    %23 = vector.load %arg4[%c0_5, %c0_6] : memref<32x32xf32, #tpu.memory_space<vmem>>, vector<32x32xf32>
    %cst_7 = arith.constant dense<0.000000e+00> : vector<32x1280xf32>
    %24 = tpu.matmul %23, %22, %cst_7 {dimension_numbers = #tpu.dot_dimension_numbers<[1], [0], [0], [1], [0, 0, 1, 1], [], []>} : vector<32x32xf32>, vector<32x1280xf32>, vector<32x1280xf32> -> vector<32x1280xf32>
    %c0_8 = arith.constant 0 : index
    %c0_9 = arith.constant 0 : index
    %25 = vector.load %arg5[%c0_8, %c0_9] : memref<32x1xf32, #tpu.memory_space<vmem>>, vector<32x1xf32>
    %26 = vector.broadcast %25 : vector<32x1xf32> to vector<32x1280xf32>
    %27 = arith.addf %24, %26 : vector<32x1280xf32>
    %28 = math.tanh %27 : vector<32x1280xf32>
    %c0_10 = arith.constant 0 : index
    %c0_11 = arith.constant 0 : index
    %29 = vector.load %arg6[%c0_10, %c0_11] : memref<32x1xf32, #tpu.memory_space<vmem>>, vector<32x1xf32>
    %30 = vector.broadcast %29 : vector<32x1xf32> to vector<32x1280xf32>
    %31 = arith.mulf %28, %30 : vector<32x1280xf32>
    %32 = vector.extract_strided_slice %31 {offsets = [0, 0], sizes = [16, 1280], strides = [1, 1]} : vector<32x1280xf32> to vector<16x1280xf32>
    %33 = vector.extract_strided_slice %31 {offsets = [16, 0], sizes = [16, 1280], strides = [1, 1]} : vector<32x1280xf32> to vector<16x1280xf32>
    %34 = arith.addf %32, %33 : vector<16x1280xf32>
    %35 = vector.extract_strided_slice %34 {offsets = [0, 0], sizes = [8, 1280], strides = [1, 1]} : vector<16x1280xf32> to vector<8x1280xf32>
    %36 = vector.extract_strided_slice %34 {offsets = [8, 0], sizes = [8, 1280], strides = [1, 1]} : vector<16x1280xf32> to vector<8x1280xf32>
    %37 = arith.addf %35, %36 : vector<8x1280xf32>
    %cst_12 = arith.constant dense<0.000000e+00> : vector<1280xf32>
    %38 = vector.multi_reduction <add>, %37, %cst_12 [0] : vector<8x1280xf32> to vector<1280xf32>
    %39 = vector.shape_cast %38 : vector<1280xf32> to vector<1x1280xf32>
    %40 = arith.mulf %6, %39 : vector<1x1280xf32>
    %c0_13 = arith.constant 0 : index
    %c0_14 = arith.constant 0 : index
    %41 = vector.load %arg7[%c0_13, %c0_14] : memref<1x1280xf32, #tpu.memory_space<vmem>>, vector<1x1280xf32>
    tpu.vector_store %arg7[%c0_13, %c0_14], %40 {strides = array<i32>} : memref<1x1280xf32, #tpu.memory_space<vmem>>, vector<1x1280xf32>,
    return
  }
  func.func @transform_0(%arg0: i32) -> (i32, i32) {
    %c0_i32 = arith.constant 0 : i32
    %c0_i32_0 = arith.constant 0 : i32
    return %c0_i32, %arg0 : i32, i32
  }
  func.func @transform_1(%arg0: i32) -> (i32, i32) {
    %c0_i32 = arith.constant 0 : i32
    %c0_i32_0 = arith.constant 0 : i32
    %c0_i32_1 = arith.constant 0 : i32
    return %c0_i32, %c0_i32_0 : i32, i32
  }
  func.func @transform_2(%arg0: i32) -> (i32, i32) {
    %c0_i32 = arith.constant 0 : i32
    %c0_i32_0 = arith.constant 0 : i32
    %c0_i32_1 = arith.constant 0 : i32
    return %c0_i32, %c0_i32_0 : i32, i32
  }
  func.func @transform_3(%arg0: i32) -> (i32, i32) {
    %c0_i32 = arith.constant 0 : i32
    %c0_i32_0 = arith.constant 0 : i32
    %c0_i32_1 = arith.constant 0 : i32
    return %c0_i32, %c0_i32_0 : i32, i32
  }
  func.func @transform_4(%arg0: i32) -> (i32, i32) {
    %c0_i32 = arith.constant 0 : i32
    %c0_i32_0 = arith.constant 0 : i32
    %c0_i32_1 = arith.constant 0 : i32
    return %c0_i32, %c0_i32_0 : i32, i32
  }
  func.func @transform_5(%arg0: i32) -> (i32, i32) {
    %c0_i32 = arith.constant 0 : i32
    %c0_i32_0 = arith.constant 0 : i32
    %c0_i32_1 = arith.constant 0 : i32
    return %c0_i32, %c0_i32_0 : i32, i32
  }
  func.func @transform_6(%arg0: i32) -> (i32, i32) {
    %c0_i32 = arith.constant 0 : i32
    %c0_i32_0 = arith.constant 0 : i32
    return %c0_i32, %arg0 : i32, i32
  }
}

</mosaic_0001>

<llo_original>
// kernel: tpu_custom_call.1
$region0: #{tpu_custom_call.1}
  #allocation0 [shape = 'u32[]', space=smem, size = 0x4, offset = 0x4, fixed_abs, tag = 'smem constant byte address 0x4 - core index']
  #allocation1 [shape = 'u32[144,128]{1,0:T(1,128)}', space=vmem, size = 0x12000, scoped, tag = 'internal scratch']
  %s0 = inlined_call_operand.vmem [shape: f32[2,2560], index: 0, kind: input, shape index: {}]
  %s1 = inlined_call_operand.vmem [shape: f32[32,2], index: 1, kind: input, shape index: {}]
  %s2 = inlined_call_operand.vmem [shape: f32[32,1], index: 2, kind: input, shape index: {}]
  %s3 = inlined_call_operand.vmem [shape: f32[32,32], index: 3, kind: input, shape index: {}]
  %s4 = inlined_call_operand.vmem [shape: f32[32,1], index: 4, kind: input, shape index: {}]
  %s5 = inlined_call_operand.vmem [shape: f32[32,1], index: 5, kind: input, shape index: {}]
  %s6 = inlined_call_operand.hbm [shape: f32[1,2560], index: 6, kind: output, shape index: {}]
  %s7 = sld [smem:[#allocation0]]
  $region57: #{tpu_custom_call.1} parent=0
    _
  %s9 = ssub.s32 1, %s7
  %s10 = scalar_select 0, %s9, %s7
  $region1: #{tpu_custom_call.1} parent=0
    #allocation2 [shape = 'u8[10240]{0}', space=vmem, size = 0x2800, scoped, tag = 'output window, operand 0']
    #allocation3 [shape = 's32[2]{0}', space=sflag, size = 0x8, scoped, tag = 'scoped memory for tpu_custom_call.1']
    %11 = vsyncpa [#allocation3], 0
    %s12 = scalar_lea.sflag [#allocation3], 1
    %13 = vsyncpa %s12, 0
    loop: start=0, step=1, limit=4
    $region2: #{tpu_custom_call.1} parent=1 // loop_pre_header
      _
    $region3: #{tpu_custom_call.1} parent=1 // loop_header
      %s15 = sphi 0, %s19
      %p16 = scmp.ge.s32.totalorder %s15, 4
      %s25 = sphi 0, %s27
      %s28 = sphi 0, %s25
      %s29 = sphi 0, %s28
      %s45 = sphi 0, %s29
      %s49 = sphi 0, %s49
      %s51 = sphi 0, %s49
      %s52 = sphi 0, %s51
      %s66 = sphi 0, %s52
      %s70 = sphi 0, %s70
      %s72 = sphi 0, %s70
      %s73 = sphi 0, %s72
      %s87 = sphi 0, %s73
      %s91 = sphi 0, %s91
      %s93 = sphi 0, %s91
      %s94 = sphi 0, %s93
      %s108 = sphi 0, %s94
      %s112 = sphi 0, %s112
      %s114 = sphi 0, %s112
      %s115 = sphi 0, %s114
      %s129 = sphi 0, %s115
      %s133 = sphi 0, %s133
      %s135 = sphi 0, %s133
      %s136 = sphi 0, %s135
      %s150 = sphi 0, %s136
      %s156 = sphi 0, %s158
      %s159 = sphi 0, %s156
      %s160 = sphi 0, %s159
      %s176 = sphi 0, %s160
    $region4: #{tpu_custom_call.1} parent=1 // loop_header_branch
      %18 = sbr.rel (%p16) target = $region8
    $region5: #{tpu_custom_call.1} parent=1 // loop_body
      %s20 = ssub.s32 %s15, 1
      %s21 = ssub.s32 %s15, 2
      %s22 = sadd.s32 %s15, 1
      %s23 = ssub.s32 %s15, %s22
      %p24 = scmp.eq.s32.totalorder %s23, 0
      %s26 = sadd.s32 %s25, 1
      %s27 = scalar_select %p24, %s25, %s26
      %p30 = pneg %p24
      %p31 = scmp.eq.s32.totalorder %s15, 1
      %p32 = por %p30, %p31
      %p33 = scmp.ne.s32.totalorder %s25, %s28
      %p34 = scmp.eq.s32.totalorder %s15, 0
      %p35 = por %p33, %p34
      %p36 = scmp.ne.s32.totalorder %s25, %s28
      %p37 = scmp.eq.s32.totalorder %s20, 1
      %p38 = por %p36, %p37
      %p39 = scmp.ne.s32.totalorder %s28, %s29
      %p40 = scmp.eq.s32.totalorder %s20, 0
      %p41 = por %p39, %p40
      %p42 = scmp.ne.s32.totalorder %s28, %s29
      %p43 = scmp.eq.s32.totalorder %s21, 1
      %p44 = por %p42, %p43
      %p46 = scmp.ne.s32.totalorder %s29, %s45
      %p47 = scmp.eq.s32.totalorder %s21, 0
      %p48 = por %p46, %p47
      %s50 = sadd.s32 %s49, 1
      %p53 = scmp.eq.s32.totalorder %s15, 1
      %p54 = scmp.ne.s32.totalorder %s49, %s51
      %p55 = scmp.eq.s32.totalorder %s15, 0
      %p56 = por %p54, %p55
      %p57 = scmp.ne.s32.totalorder %s49, %s51
      %p58 = scmp.eq.s32.totalorder %s20, 1
      %p59 = por %p57, %p58
      %p60 = scmp.ne.s32.totalorder %s51, %s52
      %p61 = scmp.eq.s32.totalorder %s20, 0
      %p62 = por %p60, %p61
      %p63 = scmp.ne.s32.totalorder %s51, %s52
      %p64 = scmp.eq.s32.totalorder %s21, 1
      %p65 = por %p63, %p64
      %p67 = scmp.ne.s32.totalorder %s52, %s66
      %p68 = scmp.eq.s32.totalorder %s21, 0
      %p69 = por %p67, %p68
      %s71 = sadd.s32 %s70, 1
      %p74 = scmp.eq.s32.totalorder %s15, 1
      %p75 = scmp.ne.s32.totalorder %s70, %s72
      %p76 = scmp.eq.s32.totalorder %s15, 0
      %p77 = por %p75, %p76
      %p78 = scmp.ne.s32.totalorder %s70, %s72
      %p79 = scmp.eq.s32.totalorder %s20, 1
      %p80 = por %p78, %p79
      %p81 = scmp.ne.s32.totalorder %s72, %s73
      %p82 = scmp.eq.s32.totalorder %s20, 0
      %p83 = por %p81, %p82
      %p84 = scmp.ne.s32.totalorder %s72, %s73
      %p85 = scmp.eq.s32.totalorder %s21, 1
      %p86 = por %p84, %p85
      %p88 = scmp.ne.s32.totalorder %s73, %s87
      %p89 = scmp.eq.s32.totalorder %s21, 0
      %p90 = por %p88, %p89
      %s92 = sadd.s32 %s91, 1
      %p95 = scmp.eq.s32.totalorder %s15, 1
      %p96 = scmp.ne.s32.totalorder %s91, %s93
      %p97 = scmp.eq.s32.totalorder %s15, 0
      %p98 = por %p96, %p97
      %p99 = scmp.ne.s32.totalorder %s91, %s93
      %p100 = scmp.eq.s32.totalorder %s20, 1
      %p101 = por %p99, %p100
      %p102 = scmp.ne.s32.totalorder %s93, %s94
      %p103 = scmp.eq.s32.totalorder %s20, 0
      %p104 = por %p102, %p103
      %p105 = scmp.ne.s32.totalorder %s93, %s94
      %p106 = scmp.eq.s32.totalorder %s21, 1
      %p107 = por %p105, %p106
      %p109 = scmp.ne.s32.totalorder %s94, %s108
      %p110 = scmp.eq.s32.totalorder %s21, 0
      %p111 = por %p109, %p110
      %s113 = sadd.s32 %s112, 1
      %p116 = scmp.eq.s32.totalorder %s15, 1
      %p117 = scmp.ne.s32.totalorder %s112, %s114
      %p118 = scmp.eq.s32.totalorder %s15, 0
      %p119 = por %p117, %p118
      %p120 = scmp.ne.s32.totalorder %s112, %s114
      %p121 = scmp.eq.s32.totalorder %s20, 1
      %p122 = por %p120, %p121
      %p123 = scmp.ne.s32.totalorder %s114, %s115
      %p124 = scmp.eq.s32.totalorder %s20, 0
      %p125 = por %p123, %p124
      %p126 = scmp.ne.s32.totalorder %s114, %s115
      %p127 = scmp.eq.s32.totalorder %s21, 1
      %p128 = por %p126, %p127
      %p130 = scmp.ne.s32.totalorder %s115, %s129
      %p131 = scmp.eq.s32.totalorder %s21, 0
      %p132 = por %p130, %p131
      %s134 = sadd.s32 %s133, 1
      %p137 = scmp.eq.s32.totalorder %s15, 1
      %p138 = scmp.ne.s32.totalorder %s133, %s135
      %p139 = scmp.eq.s32.totalorder %s15, 0
      %p140 = por %p138, %p139
      %p141 = scmp.ne.s32.totalorder %s133, %s135
      %p142 = scmp.eq.s32.totalorder %s20, 1
      %p143 = por %p141, %p142
      %p144 = scmp.ne.s32.totalorder %s135, %s136
      %p145 = scmp.eq.s32.totalorder %s20, 0
      %p146 = por %p144, %p145
      %p147 = scmp.ne.s32.totalorder %s135, %s136
      %p148 = scmp.eq.s32.totalorder %s21, 1
      %p149 = por %p147, %p148
      %p151 = scmp.ne.s32.totalorder %s136, %s150
      %p152 = scmp.eq.s32.totalorder %s21, 0
      %p153 = por %p151, %p152
      %s154 = ssub.s32 %s15, %s22
      %p155 = scmp.eq.s32.totalorder %s154, 0
      %s157 = sadd.s32 %s156, 1
      %s158 = scalar_select %p155, %s156, %s157
      %p161 = pneg %p155
      %p162 = scmp.eq.s32.totalorder %s15, 1
      %p163 = por %p161, %p162
      %p164 = scmp.ne.s32.totalorder %s156, %s159
      %p165 = scmp.eq.s32.totalorder %s15, 0
      %p166 = por %p164, %p165
      %p167 = scmp.ne.s32.totalorder %s156, %s159
      %p168 = scmp.eq.s32.totalorder %s20, 1
      %p169 = por %p167, %p168
      %p170 = scmp.ne.s32.totalorder %s159, %s160
      %p171 = scmp.eq.s32.totalorder %s20, 0
      %p172 = por %p170, %p171
      %p173 = scmp.ne.s32.totalorder %s159, %s160
      %p174 = scmp.eq.s32.totalorder %s21, 1
      %p175 = por %p173, %p174
      %p177 = scmp.ne.s32.totalorder %s160, %s176
      %p178 = scmp.eq.s32.totalorder %s21, 0
      %p179 = por %p177, %p178
      %p180 = scmp.le.s32.totalorder 1, %s15
      %p181 = scmp.lt.s32.totalorder %s15, 3
      %p182 = pnand %p180, %p181
      %p183 = pneg %p182
      // Predicated region
      $region9: #{tpu_custom_call.1} parent=5 // pred_check
        _
      $region10: #{tpu_custom_call.1} parent=5 // pred_check_branch
        %185 = sbr.rel (%p182) target = $region12
      $region11: #{tpu_custom_call.1} parent=5 // pred_region
        %s186 = ssub.s32 %s15, 1
        // Predicated region
        $region13: #{tpu_custom_call.1} parent=11 // pred_check
          %p187 = pneg %p62
        $region14: #{tpu_custom_call.1} parent=11 // pred_check_branch
          %189 = sbr.rel (%p187) target = $region16
        $region15: #{tpu_custom_call.1} parent=11 // pred_region
          _
        $region16: #{tpu_custom_call.1} parent=11 // pred_fallthru
          _
        // Predicated region
        $region17: #{tpu_custom_call.1} parent=11 // pred_check
          %p190 = pneg %p83
        $region18: #{tpu_custom_call.1} parent=11 // pred_check_branch
          %192 = sbr.rel (%p190) target = $region20
        $region19: #{tpu_custom_call.1} parent=11 // pred_region
          _
        $region20: #{tpu_custom_call.1} parent=11 // pred_fallthru
          _
        // Predicated region
        $region21: #{tpu_custom_call.1} parent=11 // pred_check
          %p193 = pneg %p104
        $region22: #{tpu_custom_call.1} parent=11 // pred_check_branch
          %195 = sbr.rel (%p193) target = $region24
        $region23: #{tpu_custom_call.1} parent=11 // pred_region
          _
        $region24: #{tpu_custom_call.1} parent=11 // pred_fallthru
          _
        // Predicated region
        $region25: #{tpu_custom_call.1} parent=11 // pred_check
          %p196 = pneg %p125
        $region26: #{tpu_custom_call.1} parent=11 // pred_check_branch
          %198 = sbr.rel (%p196) target = $region28
        $region27: #{tpu_custom_call.1} parent=11 // pred_region
          _
        $region28: #{tpu_custom_call.1} parent=11 // pred_fallthru
          _
        // Predicated region
        $region29: #{tpu_custom_call.1} parent=11 // pred_check
          %p199 = pneg %p146
        $region30: #{tpu_custom_call.1} parent=11 // pred_check_branch
          %201 = sbr.rel (%p199) target = $region32
        $region31: #{tpu_custom_call.1} parent=11 // pred_region
          _
        $region32: #{tpu_custom_call.1} parent=11 // pred_fallthru
          _
      $region12: #{tpu_custom_call.1} parent=5 // pred_fallthru
        _
      %p202 = scmp.lt.s32.totalorder %s15, 2
      // Predicated region
      $region33: #{tpu_custom_call.1} parent=5 // pred_check
        %p203 = pneg %p202
      $region34: #{tpu_custom_call.1} parent=5 // pred_check_branch
        %205 = sbr.rel (%p203) target = $region36
      $region35: #{tpu_custom_call.1} parent=5 // pred_region
        // Predicated region
        $region37: #{tpu_custom_call.1} parent=35 // pred_check
          %p206 = pneg %p35
        $region38: #{tpu_custom_call.1} parent=35 // pred_check_branch
          %208 = sbr.rel (%p206) target = $region40
        $region39: #{tpu_custom_call.1} parent=35 // pred_region
          %s209 = smul.u32 10, %s15
          %p210 = scmp.lt.s32.totalorder %s209, 19
          %s211 = scalar_select %p210, %s209, 19
          %s212 = smul.addr %s211, 2
          %s213 = scalar_lea.vmem %s0, %s212
          %s214 = smul.u32 10, %s15
        $region40: #{tpu_custom_call.1} parent=35 // pred_fallthru
          _
      $region36: #{tpu_custom_call.1} parent=5 // pred_fallthru
        _
      %p215 = scmp.le.s32.totalorder 1, %s15
      %p216 = scmp.lt.s32.totalorder %s15, 3
      %p217 = pnand %p215, %p216
      %p218 = pneg %p217
      // Predicated region
      $region41: #{tpu_custom_call.1} parent=5 // pred_check
        _
      $region42: #{tpu_custom_call.1} parent=5 // pred_check_branch
        %220 = sbr.rel (%p217) target = $region44
      $region43: #{tpu_custom_call.1} parent=5 // pred_region
        %s221 = ssub.s32 %s15, 1
        %s222 = smul.u32 10, %s20
        %p223 = scmp.lt.s32.totalorder %s222, 19
        %s224 = scalar_select %p223, %s222, 19
        %s225 = smul.addr %s224, 2
        %s226 = scalar_lea.vmem %s0, %s225
        %p227 = pneg %p41
        %p228 = pneg %p38
        %p229 = pneg %p62
        %p230 = pneg %p59
        %p231 = pneg %p83
        %p232 = pneg %p80
        %p233 = pneg %p104
        %p234 = pneg %p101
        %p235 = pneg %p125
        %p236 = pneg %p122
        %p237 = pneg %p146
        %p238 = pneg %p143
        %p239 = pneg %p172
        %p240 = pneg %p169
        %s241 = sand.u32 %s159, 1
        %s242 = scalar_lea.sflag [#allocation3], %s241
        %s243 = sand.u32 %s159, 1
        %s244 = smul.addr %s243, 10
        %s245 = scalar_lea.vmem [#allocation2], %s244
        %s246 = smul.u32 10, %s20
        %p247 = scmp.lt.s32.totalorder %s246, 19
        %s248 = scalar_select %p247, %s246, 19
        %s249 = smul.addr %s248, 2
        %s250 = scalar_lea.vmem %s0, %s249
        %s251 = smul.u32 10, %s20
        %s252 = smul.u32 10, %s20
        %v253 = vld [vmem:[%s250] sm:$0xff]
        %v254 = vld [vmem:[%s250 + $0x8] sm:$0xff]
        %v255 = vld [vmem:[%s250 + $0x10] sm:$0xf]
        %v256 = vmul.f32 %v253, 3.1415927
        %v257 = vmul.f32 %v254, 3.1415927
        %v258 = vmul.f32 %v255, 3.1415927
        %v259 = vand.u32 2147483647, %v256
        %vm260 = vcmp.le.f32.partialorder %v259, 0.7853982
        %vm261 = vcmp.lt.s32.totalorder %v256, 0
        %v262 = vand.u32 %v256, 2139095040
        %v263 = vshrl.u32 %v262, 23
        %v264 = vsub.s32 %v263, 127
        %v265 = vand.u32 2147483647, %v256
        %v266 = vand.u32 %v265, 8388607
        %v267 = vor.u32 %v266, 8388608
        %v268 = vsub.s32 0, %v267
        %v269 = vadd.s32 %v264, 1
        %vm270 = vcmp.gt.s32.totalorder %v269, 0
        %v271 = vsel %vm270, %v269, 0
        %v272 = vshrl.u32 %v271, 5
        %v273 = vand.u32 %v271, 31
        %v274 = vsub.s32 32, %v273
        %v275 = vshrl.u32 683565275, %v274
        %v276 = vshll.u32 683565275, %v273
        %v277 = vshrl.u32 2475754826, %v274
        %v278 = vor.u32 %v276, %v277
        %v279 = vshll.u32 2475754826, %v273
        %v280 = vshrl.u32 2131351028, %v274
        %v281 = vor.u32 %v279, %v280
        %v282 = vshll.u32 2131351028, %v273
        %v283 = vshrl.u32 2102212464, %v274
        %v284 = vor.u32 %v282, %v283
        %v285 = vshll.u32 2102212464, %v273
        %v286 = vshrl.u32 920167782, %v274
        %v287 = vor.u32 %v285, %v286
        %v288 = vshll.u32 920167782, %v273
        %v289 = vshrl.u32 1326507024, %v274
        %v290 = vor.u32 %v288, %v289
        %vm291 = vcmp.lt.s32.totalorder %v272, 1
        %vm292 = vcmp.lt.s32.totalorder %v272, 2
        %vm293 = vcmp.lt.s32.totalorder %v272, 3
        %vm294 = vcmp.lt.s32.totalorder %v272, 4
        %v295 = vsel %vm291, %v275, %v278
        %v296 = vsel %vm294, %v284, 2102212464
        %v297 = vsel %vm293, %v281, %v296
        %v298 = vsel %vm292, %v295, %v297
        %v299 = vsel %vm291, %v278, %v281
        %v300 = vsel %vm294, %v287, 920167782
        %v301 = vsel %vm293, %v284, %v300
        %v302 = vsel %vm292, %v299, %v301
        %v303 = vsel %vm291, %v281, %v284
        %v304 = vsel %vm294, %v290, 1326507024
        %v305 = vsel %vm293, %v287, %v304
        %v306 = vsel %vm292, %v303, %v305
        %v307 = vshll.u32 %v267, 8
        %v308 = vmul.u32.u64.compose %v307, %v306
        %v309 = vextract.low.u32 %v308
        %v310 = vextract.high.u32 %v308
        %v311 = vmul.u32.u64.compose %v307, %v302
        %v312 = vextract.low.u32 %v311
        %v313 = vextract.high.u32 %v311
        %v314 = vmul.u32 %v307, %v298
        %v315 = vadd.s32 %v310, %v312
        %vm316 = vc.u32 %v310, %v312
        %v317 = vadd.s32 %v313, 1
        %v318 = vsel %vm316, %v317, %v313
        %v319 = vadd.s32 %v314, %v318
        %v320 = vadd.s32 %v319, 536870912
        %v321 = vshrl.u32 %v320, 30
        %v322 = vshll.u32 %v321, 30
        %v323 = vsub.s32 %v319, %v322
        %vm324 = vcmp.lt.s32.totalorder %v323, 0
        %v325 = vsub.s32 0, %v323
        %v326 = vsel %vm324, %v325, %v323
        %v327 = vclz %v326
        %v328 = vsub.s32 %v327, 2
        %vm329 = vcmp.gt.s32.totalorder 0, %v328
        %v330 = vsel %vm329, 0, %v328
        %v331 = vsub.s32 32, %v330
        %v332 = vshll.u32 %v323, %v330
        %v333 = vshrl.u32 %v315, %v331
        %v334 = vor.u32 %v332, %v333
        %v335 = vsub.s32 4294967266, %v330
        %v336 = vadd.s32 %v335, 127
        %v337 = vshll.u32 %v336, 23
        %v338 = vor.u32 4788187, %v337
        %v339 = vand.u32 2147483647, %v338
        %v341 = vcvt.s32.f32 %v334
        %v342 = vmul.f32 %v341, %v339
        %v343 = vxor.u32 %v342, 2147483648
        %v344 = vsel %vm261, %v343, %v342
        %v345 = vsub.s32 4, %v321
        %v346 = vsel %vm261, %v345, %v321
        %v347 = vsel %vm260, %v256, %v344
        %v348 = vsel %vm260, 0, %v346
        %v349 = vcosq.f32.pop %v347
        %v350 = vsinq.f32.pop %v347
        %vm351 = vweird.f32 %v256
        %v352 = vadd.s32 %v348, 3
        %v353 = vand.u32 %v352, 3
        %vm354 = vcmp.lt.s32.totalorder %v353, 2
        %vm355 = vcmp.eq.s32.totalorder %v353, 0
        %v356 = vxor.u32 %v350, 2147483648
        %v357 = vsel %vm355, %v349, %v356
        %vm358 = vcmp.eq.s32.totalorder %v353, 2
        %v359 = vxor.u32 %v349, 2147483648
        %v360 = vsel %vm358, %v359, %v350
        %v361 = vsel %vm354, %v357, %v360
        %v362 = vsel %vm351, nan, %v361
        %v363 = vand.u32 2147483647, %v257
        %vm364 = vcmp.le.f32.partialorder %v363, 0.7853982
        %vm365 = vcmp.lt.s32.totalorder %v257, 0
        %v366 = vand.u32 %v257, 2139095040
        %v367 = vshrl.u32 %v366, 23
        %v368 = vsub.s32 %v367, 127
        %v369 = vand.u32 2147483647, %v257
        %v370 = vand.u32 %v369, 8388607
        %v371 = vor.u32 %v370, 8388608
        %v372 = vsub.s32 0, %v371
        %v373 = vadd.s32 %v368, 1
        %vm374 = vcmp.gt.s32.totalorder %v373, 0
        %v375 = vsel %vm374, %v373, 0
        %v376 = vshrl.u32 %v375, 5
        %v377 = vand.u32 %v375, 31
        %v378 = vsub.s32 32, %v377
        %v379 = vshrl.u32 683565275, %v378
        %v380 = vshll.u32 683565275, %v377
        %v381 = vshrl.u32 2475754826, %v378
        %v382 = vor.u32 %v380, %v381
        %v383 = vshll.u32 2475754826, %v377
        %v384 = vshrl.u32 2131351028, %v378
        %v385 = vor.u32 %v383, %v384
        %v386 = vshll.u32 2131351028, %v377
        %v387 = vshrl.u32 2102212464, %v378
        %v388 = vor.u32 %v386, %v387
        %v389 = vshll.u32 2102212464, %v377
        %v390 = vshrl.u32 920167782, %v378
        %v391 = vor.u32 %v389, %v390
        %v392 = vshll.u32 920167782, %v377
        %v393 = vshrl.u32 1326507024, %v378
        %v394 = vor.u32 %v392, %v393
        %vm395 = vcmp.lt.s32.totalorder %v376, 1
        %vm396 = vcmp.lt.s32.totalorder %v376, 2
        %vm397 = vcmp.lt.s32.totalorder %v376, 3
        %vm398 = vcmp.lt.s32.totalorder %v376, 4
        %v399 = vsel %vm395, %v379, %v382
        %v400 = vsel %vm398, %v388, 2102212464
        %v401 = vsel %vm397, %v385, %v400
        %v402 = vsel %vm396, %v399, %v401
        %v403 = vsel %vm395, %v382, %v385
        %v404 = vsel %vm398, %v391, 920167782
        %v405 = vsel %vm397, %v388, %v404
        %v406 = vsel %vm396, %v403, %v405
        %v407 = vsel %vm395, %v385, %v388
        %v408 = vsel %vm398, %v394, 1326507024
        %v409 = vsel %vm397, %v391, %v408
        %v410 = vsel %vm396, %v407, %v409
        %v411 = vshll.u32 %v371, 8
        %v412 = vmul.u32.u64.compose %v411, %v410
        %v413 = vextract.low.u32 %v412
        %v414 = vextract.high.u32 %v412
        %v415 = vmul.u32.u64.compose %v411, %v406
        %v416 = vextract.low.u32 %v415
        %v417 = vextract.high.u32 %v415
        %v418 = vmul.u32 %v411, %v402
        %v419 = vadd.s32 %v414, %v416
        %vm420 = vc.u32 %v414, %v416
        %v421 = vadd.s32 %v417, 1
        %v422 = vsel %vm420, %v421, %v417
        %v423 = vadd.s32 %v418, %v422
        %v424 = vadd.s32 %v423, 536870912
        %v425 = vshrl.u32 %v424, 30
        %v426 = vshll.u32 %v425, 30
        %v427 = vsub.s32 %v423, %v426
        %vm428 = vcmp.lt.s32.totalorder %v427, 0
        %v429 = vsub.s32 0, %v427
        %v430 = vsel %vm428, %v429, %v427
        %v431 = vclz %v430
        %v432 = vsub.s32 %v431, 2
        %vm433 = vcmp.gt.s32.totalorder 0, %v432
        %v434 = vsel %vm433, 0, %v432
        %v435 = vsub.s32 32, %v434
        %v436 = vshll.u32 %v427, %v434
        %v437 = vshrl.u32 %v419, %v435
        %v438 = vor.u32 %v436, %v437
        %v439 = vsub.s32 4294967266, %v434
        %v440 = vadd.s32 %v439, 127
        %v441 = vshll.u32 %v440, 23
        %v442 = vor.u32 4788187, %v441
        %v443 = vand.u32 2147483647, %v442
        %v445 = vcvt.s32.f32 %v438
        %v446 = vmul.f32 %v445, %v443
        %v447 = vxor.u32 %v446, 2147483648
        %v448 = vsel %vm365, %v447, %v446
        %v449 = vsub.s32 4, %v425
        %v450 = vsel %vm365, %v449, %v425
        %v451 = vsel %vm364, %v257, %v448
        %v452 = vsel %vm364, 0, %v450
        %v453 = vcosq.f32.pop %v451
        %v454 = vsinq.f32.pop %v451
        %vm455 = vweird.f32 %v257
        %v456 = vadd.s32 %v452, 3
        %v457 = vand.u32 %v456, 3
        %vm458 = vcmp.lt.s32.totalorder %v457, 2
        %vm459 = vcmp.eq.s32.totalorder %v457, 0
        %v460 = vxor.u32 %v454, 2147483648
        %v461 = vsel %vm459, %v453, %v460
        %vm462 = vcmp.eq.s32.totalorder %v457, 2
        %v463 = vxor.u32 %v453, 2147483648
        %v464 = vsel %vm462, %v463, %v454
        %v465 = vsel %vm458, %v461, %v464
        %v466 = vsel %vm455, nan, %v465
        %v467 = vand.u32 2147483647, %v258
        %vm468 = vcmp.le.f32.partialorder %v467, 0.7853982
        %vm469 = vcmp.lt.s32.totalorder %v258, 0
        %v470 = vand.u32 %v258, 2139095040
        %v471 = vshrl.u32 %v470, 23
        %v472 = vsub.s32 %v471, 127
        %v473 = vand.u32 2147483647, %v258
        %v474 = vand.u32 %v473, 8388607
        %v475 = vor.u32 %v474, 8388608
        %v476 = vsub.s32 0, %v475
        %v477 = vadd.s32 %v472, 1
        %vm478 = vcmp.gt.s32.totalorder %v477, 0
        %v479 = vsel %vm478, %v477, 0
        %v480 = vshrl.u32 %v479, 5
        %v481 = vand.u32 %v479, 31
        %v482 = vsub.s32 32, %v481
        %v483 = vshrl.u32 683565275, %v482
        %v484 = vshll.u32 683565275, %v481
        %v485 = vshrl.u32 2475754826, %v482
        %v486 = vor.u32 %v484, %v485
        %v487 = vshll.u32 2475754826, %v481
        %v488 = vshrl.u32 2131351028, %v482
        %v489 = vor.u32 %v487, %v488
        %v490 = vshll.u32 2131351028, %v481
        %v491 = vshrl.u32 2102212464, %v482
        %v492 = vor.u32 %v490, %v491
        %v493 = vshll.u32 2102212464, %v481
        %v494 = vshrl.u32 920167782, %v482
        %v495 = vor.u32 %v493, %v494
        %v496 = vshll.u32 920167782, %v481
        %v497 = vshrl.u32 1326507024, %v482
        %v498 = vor.u32 %v496, %v497
        %vm499 = vcmp.lt.s32.totalorder %v480, 1
        %vm500 = vcmp.lt.s32.totalorder %v480, 2
        %vm501 = vcmp.lt.s32.totalorder %v480, 3
        %vm502 = vcmp.lt.s32.totalorder %v480, 4
        %v503 = vsel %vm499, %v483, %v486
        %v504 = vsel %vm502, %v492, 2102212464
        %v505 = vsel %vm501, %v489, %v504
        %v506 = vsel %vm500, %v503, %v505
        %v507 = vsel %vm499, %v486, %v489
        %v508 = vsel %vm502, %v495, 920167782
        %v509 = vsel %vm501, %v492, %v508
        %v510 = vsel %vm500, %v507, %v509
        %v511 = vsel %vm499, %v489, %v492
        %v512 = vsel %vm502, %v498, 1326507024
        %v513 = vsel %vm501, %v495, %v512
        %v514 = vsel %vm500, %v511, %v513
        %v515 = vshll.u32 %v475, 8
        %v516 = vmul.u32.u64.compose %v515, %v514
        %v517 = vextract.low.u32 %v516
        %v518 = vextract.high.u32 %v516
        %v519 = vmul.u32.u64.compose %v515, %v510
        %v520 = vextract.low.u32 %v519
        %v521 = vextract.high.u32 %v519
        %v522 = vmul.u32 %v515, %v506
        %v523 = vadd.s32 %v518, %v520
        %vm524 = vc.u32 %v518, %v520
        %v525 = vadd.s32 %v521, 1
        %v526 = vsel %vm524, %v525, %v521
        %v527 = vadd.s32 %v522, %v526
        %v528 = vadd.s32 %v527, 536870912
        %v529 = vshrl.u32 %v528, 30
        %v530 = vshll.u32 %v529, 30
        %v531 = vsub.s32 %v527, %v530
        %vm532 = vcmp.lt.s32.totalorder %v531, 0
        %v533 = vsub.s32 0, %v531
        %v534 = vsel %vm532, %v533, %v531
        %v535 = vclz %v534
        %v536 = vsub.s32 %v535, 2
        %vm537 = vcmp.gt.s32.totalorder 0, %v536
        %v538 = vsel %vm537, 0, %v536
        %v539 = vsub.s32 32, %v538
        %v540 = vshll.u32 %v531, %v538
        %v541 = vshrl.u32 %v523, %v539
        %v542 = vor.u32 %v540, %v541
        %v543 = vsub.s32 4294967266, %v538
        %v544 = vadd.s32 %v543, 127
        %v545 = vshll.u32 %v544, 23
        %v546 = vor.u32 4788187, %v545
        %v547 = vand.u32 2147483647, %v546
        %v549 = vcvt.s32.f32 %v542
        %v550 = vmul.f32 %v549, %v547
        %v551 = vxor.u32 %v550, 2147483648
        %v552 = vsel %vm469, %v551, %v550
        %v553 = vsub.s32 4, %v529
        %v554 = vsel %vm469, %v553, %v529
        %v555 = vsel %vm468, %v258, %v552
        %v556 = vsel %vm468, 0, %v554
        %v557 = vcosq.f32.pop %v555
        %v558 = vsinq.f32.pop %v555
        %vm559 = vweird.f32 %v258
        %v560 = vadd.s32 %v556, 3
        %v561 = vand.u32 %v560, 3
        %vm562 = vcmp.lt.s32.totalorder %v561, 2
        %vm563 = vcmp.eq.s32.totalorder %v561, 0
        %v564 = vxor.u32 %v558, 2147483648
        %v565 = vsel %vm563, %v557, %v564
        %vm566 = vcmp.eq.s32.totalorder %v561, 2
        %v567 = vxor.u32 %v557, 2147483648
        %v568 = vsel %vm566, %v567, %v558
        %v569 = vsel %vm562, %v565, %v568
        %v570 = vsel %vm559, nan, %v569
        %v574 = vrot.slane %v362, 7
        %v575 = vrot.slane %v574, 2
        %v576 = vrot.slane %v466, 7
        %v577 = vrot.slane %v576, 2
        %v578 = vrot.slane %v570, 7
        %v579 = vrot.slane %v578, 2
        %v583 = vmul.f32 %v362, %v575
        %v584 = vmul.f32 %v466, %v577
        %v585 = vmul.f32 %v570, %v579
        %v586 = vld [vmem:[%s1] sm:$0xff]
        %v587 = vld [vmem:[%s1 + $0x8] sm:$0xff]
        %v588 = vld [vmem:[%s1 + $0x10] sm:$0xff]
        %v589 = vld [vmem:[%s1 + $0x18] sm:$0xff]
        %591 = vset.pattern.permute.xlu0 0
        %592 = vperm.xlu0 %591, %v586
        %v593 = vpop.permute.xlu0 %592
        %596 = vset.pattern.permute.xlu0 0
        %597 = vperm.xlu0 %596, %v587
        %v598 = vpop.permute.xlu0 %597
        %601 = vset.pattern.permute.xlu0 0
        %602 = vperm.xlu0 %601, %v588
        %v603 = vpop.permute.xlu0 %602
        %606 = vset.pattern.permute.xlu0 0
        %607 = vperm.xlu0 %606, %v589
        %v608 = vpop.permute.xlu0 %607
        %v613 = vlaneseq
        %v614 = vshrl.u32 %v613, 7
        %v615 = vsub.s32 0, %v614
        %v616 = vrot.slane %v253, %v615
        %v617 = vlaneseq
        %v618 = vshrl.u32 %v617, 7
        %v619 = vsub.s32 2, %v618
        %v620 = vrot.slane %v253, %v619
        %v621 = vlaneseq
        %v622 = vshrl.u32 %v621, 7
        %v623 = vsub.s32 4, %v622
        %v624 = vrot.slane %v253, %v623
        %v625 = vlaneseq
        %v626 = vshrl.u32 %v625, 7
        %v627 = vsub.s32 6, %v626
        %v628 = vrot.slane %v253, %v627
        %v629 = vlaneseq
        %v630 = vshrl.u32 %v629, 7
        %v631 = vsub.s32 0, %v630
        %v632 = vrot.slane %v254, %v631
        %v633 = vlaneseq
        %v634 = vshrl.u32 %v633, 7
        %v635 = vsub.s32 2, %v634
        %v636 = vrot.slane %v254, %v635
        %v637 = vlaneseq
        %v638 = vshrl.u32 %v637, 7
        %v639 = vsub.s32 4, %v638
        %v640 = vrot.slane %v254, %v639
        %v641 = vlaneseq
        %v642 = vshrl.u32 %v641, 7
        %v643 = vsub.s32 6, %v642
        %v644 = vrot.slane %v254, %v643
        %v645 = vlaneseq
        %v646 = vshrl.u32 %v645, 7
        %v647 = vsub.s32 0, %v646
        %v648 = vrot.slane %v255, %v647
        %v649 = vlaneseq
        %v650 = vshrl.u32 %v649, 7
        %v651 = vsub.s32 2, %v650
        %v652 = vrot.slane %v255, %v651
        %v663 = vlaneseq
        %v664 = vshrl.u32 %v663, 7
        %v665 = vsub.s32 0, %v664
        %v666 = vrot.slane %v616, %v665
        %v667 = vlaneseq
        %v668 = vshrl.u32 %v667, 7
        %v669 = vsub.s32 0, %v668
        %v670 = vrot.slane %v620, %v669
        %v671 = vlaneseq
        %v672 = vshrl.u32 %v671, 7
        %v673 = vsub.s32 0, %v672
        %v674 = vrot.slane %v624, %v673
        %v675 = vlaneseq
        %v676 = vshrl.u32 %v675, 7
        %v677 = vsub.s32 0, %v676
        %v678 = vrot.slane %v628, %v677
        %v679 = vlaneseq
        %v680 = vshrl.u32 %v679, 7
        %v681 = vsub.s32 0, %v680
        %v682 = vrot.slane %v632, %v681
        %v683 = vlaneseq
        %v684 = vshrl.u32 %v683, 7
        %v685 = vsub.s32 0, %v684
        %v686 = vrot.slane %v636, %v685
        %v687 = vlaneseq
        %v688 = vshrl.u32 %v687, 7
        %v689 = vsub.s32 0, %v688
        %v690 = vrot.slane %v640, %v689
        %v691 = vlaneseq
        %v692 = vshrl.u32 %v691, 7
        %v693 = vsub.s32 0, %v692
        %v694 = vrot.slane %v644, %v693
        %v695 = vlaneseq
        %v696 = vshrl.u32 %v695, 7
        %v697 = vsub.s32 0, %v696
        %v698 = vrot.slane %v648, %v697
        %v699 = vlaneseq
        %v700 = vshrl.u32 %v699, 7
        %v701 = vsub.s32 0, %v700
        %v702 = vrot.slane %v652, %v701
        %v703 = vmul.f32 %v593, %v666
        %v704 = vmul.f32 %v593, %v670
        %v705 = vmul.f32 %v593, %v674
        %v706 = vmul.f32 %v593, %v678
        %v707 = vmul.f32 %v593, %v682
        %v708 = vmul.f32 %v593, %v686
        %v709 = vmul.f32 %v593, %v690
        %v710 = vmul.f32 %v593, %v694
        %v711 = vmul.f32 %v593, %v698
        %v712 = vmul.f32 %v593, %v702
        %v713 = vmul.f32 %v598, %v666
        %v714 = vmul.f32 %v598, %v670
        %v715 = vmul.f32 %v598, %v674
        %v716 = vmul.f32 %v598, %v678
        %v717 = vmul.f32 %v598, %v682
        %v718 = vmul.f32 %v598, %v686
        %v719 = vmul.f32 %v598, %v690
        %v720 = vmul.f32 %v598, %v694
        %v721 = vmul.f32 %v598, %v698
        %v722 = vmul.f32 %v598, %v702
        %v723 = vmul.f32 %v603, %v666
        %v724 = vmul.f32 %v603, %v670
        %v725 = vmul.f32 %v603, %v674
        %v726 = vmul.f32 %v603, %v678
        %v727 = vmul.f32 %v603, %v682
        %v728 = vmul.f32 %v603, %v686
        %v729 = vmul.f32 %v603, %v690
        %v730 = vmul.f32 %v603, %v694
        %v731 = vmul.f32 %v603, %v698
        %v732 = vmul.f32 %v603, %v702
        %v733 = vmul.f32 %v608, %v666
        %v734 = vmul.f32 %v608, %v670
        %v735 = vmul.f32 %v608, %v674
        %v736 = vmul.f32 %v608, %v678
        %v737 = vmul.f32 %v608, %v682
        %v738 = vmul.f32 %v608, %v686
        %v739 = vmul.f32 %v608, %v690
        %v740 = vmul.f32 %v608, %v694
        %v741 = vmul.f32 %v608, %v698
        %v742 = vmul.f32 %v608, %v702
        %743 = vset.pattern.permute.xlu0 1
        %744 = vperm.xlu0 %743, %v586
        %v745 = vpop.permute.xlu0 %744
        %747 = vset.pattern.permute.xlu0 1
        %748 = vperm.xlu0 %747, %v587
        %v749 = vpop.permute.xlu0 %748
        %751 = vset.pattern.permute.xlu0 1
        %752 = vperm.xlu0 %751, %v588
        %v753 = vpop.permute.xlu0 %752
        %755 = vset.pattern.permute.xlu0 1
        %756 = vperm.xlu0 %755, %v589
        %v757 = vpop.permute.xlu0 %756
        %v759 = vlaneseq
        %v760 = vshrl.u32 %v759, 7
        %v761 = vsub.s32 1, %v760
        %v762 = vrot.slane %v253, %v761
        %v763 = vlaneseq
        %v764 = vshrl.u32 %v763, 7
        %v765 = vsub.s32 3, %v764
        %v766 = vrot.slane %v253, %v765
        %v767 = vlaneseq
        %v768 = vshrl.u32 %v767, 7
        %v769 = vsub.s32 5, %v768
        %v770 = vrot.slane %v253, %v769
        %v771 = vlaneseq
        %v772 = vshrl.u32 %v771, 7
        %v773 = vsub.s32 7, %v772
        %v774 = vrot.slane %v253, %v773
        %v775 = vlaneseq
        %v776 = vshrl.u32 %v775, 7
        %v777 = vsub.s32 1, %v776
        %v778 = vrot.slane %v254, %v777
        %v779 = vlaneseq
        %v780 = vshrl.u32 %v779, 7
        %v781 = vsub.s32 3, %v780
        %v782 = vrot.slane %v254, %v781
        %v783 = vlaneseq
        %v784 = vshrl.u32 %v783, 7
        %v785 = vsub.s32 5, %v784
        %v786 = vrot.slane %v254, %v785
        %v787 = vlaneseq
        %v788 = vshrl.u32 %v787, 7
        %v789 = vsub.s32 7, %v788
        %v790 = vrot.slane %v254, %v789
        %v791 = vlaneseq
        %v792 = vshrl.u32 %v791, 7
        %v793 = vsub.s32 1, %v792
        %v794 = vrot.slane %v255, %v793
        %v795 = vlaneseq
        %v796 = vshrl.u32 %v795, 7
        %v797 = vsub.s32 3, %v796
        %v798 = vrot.slane %v255, %v797
        %v809 = vlaneseq
        %v810 = vshrl.u32 %v809, 7
        %v811 = vsub.s32 1, %v810
        %v812 = vrot.slane %v762, %v811
        %v813 = vlaneseq
        %v814 = vshrl.u32 %v813, 7
        %v815 = vsub.s32 1, %v814
        %v816 = vrot.slane %v766, %v815
        %v817 = vlaneseq
        %v818 = vshrl.u32 %v817, 7
        %v819 = vsub.s32 1, %v818
        %v820 = vrot.slane %v770, %v819
        %v821 = vlaneseq
        %v822 = vshrl.u32 %v821, 7
        %v823 = vsub.s32 1, %v822
        %v824 = vrot.slane %v774, %v823
        %v825 = vlaneseq
        %v826 = vshrl.u32 %v825, 7
        %v827 = vsub.s32 1, %v826
        %v828 = vrot.slane %v778, %v827
        %v829 = vlaneseq
        %v830 = vshrl.u32 %v829, 7
        %v831 = vsub.s32 1, %v830
        %v832 = vrot.slane %v782, %v831
        %v833 = vlaneseq
        %v834 = vshrl.u32 %v833, 7
        %v835 = vsub.s32 1, %v834
        %v836 = vrot.slane %v786, %v835
        %v837 = vlaneseq
        %v838 = vshrl.u32 %v837, 7
        %v839 = vsub.s32 1, %v838
        %v840 = vrot.slane %v790, %v839
        %v841 = vlaneseq
        %v842 = vshrl.u32 %v841, 7
        %v843 = vsub.s32 1, %v842
        %v844 = vrot.slane %v794, %v843
        %v845 = vlaneseq
        %v846 = vshrl.u32 %v845, 7
        %v847 = vsub.s32 1, %v846
        %v848 = vrot.slane %v798, %v847
        %v849 = vmul.f32 %v745, %v812
        %v850 = vmul.f32 %v745, %v816
        %v851 = vmul.f32 %v745, %v820
        %v852 = vmul.f32 %v745, %v824
        %v853 = vmul.f32 %v745, %v828
        %v854 = vmul.f32 %v745, %v832
        %v855 = vmul.f32 %v745, %v836
        %v856 = vmul.f32 %v745, %v840
        %v857 = vmul.f32 %v745, %v844
        %v858 = vmul.f32 %v745, %v848
        %v859 = vmul.f32 %v749, %v812
        %v860 = vmul.f32 %v749, %v816
        %v861 = vmul.f32 %v749, %v820
        %v862 = vmul.f32 %v749, %v824
        %v863 = vmul.f32 %v749, %v828
        %v864 = vmul.f32 %v749, %v832
        %v865 = vmul.f32 %v749, %v836
        %v866 = vmul.f32 %v749, %v840
        %v867 = vmul.f32 %v749, %v844
        %v868 = vmul.f32 %v749, %v848
        %v869 = vmul.f32 %v753, %v812
        %v870 = vmul.f32 %v753, %v816
        %v871 = vmul.f32 %v753, %v820
        %v872 = vmul.f32 %v753, %v824
        %v873 = vmul.f32 %v753, %v828
        %v874 = vmul.f32 %v753, %v832
        %v875 = vmul.f32 %v753, %v836
        %v876 = vmul.f32 %v753, %v840
        %v877 = vmul.f32 %v753, %v844
        %v878 = vmul.f32 %v753, %v848
        %v879 = vmul.f32 %v757, %v812
        %v880 = vmul.f32 %v757, %v816
        %v881 = vmul.f32 %v757, %v820
        %v882 = vmul.f32 %v757, %v824
        %v883 = vmul.f32 %v757, %v828
        %v884 = vmul.f32 %v757, %v832
        %v885 = vmul.f32 %v757, %v836
        %v886 = vmul.f32 %v757, %v840
        %v887 = vmul.f32 %v757, %v844
        %v888 = vmul.f32 %v757, %v848
        %v889 = vadd.f32 %v703, %v849
        %v890 = vadd.f32 %v704, %v850
        %v891 = vadd.f32 %v705, %v851
        %v892 = vadd.f32 %v706, %v852
        %v893 = vadd.f32 %v707, %v853
        %v894 = vadd.f32 %v708, %v854
        %v895 = vadd.f32 %v709, %v855
        %v896 = vadd.f32 %v710, %v856
        %v897 = vadd.f32 %v711, %v857
        %v898 = vadd.f32 %v712, %v858
        %v899 = vadd.f32 %v713, %v859
        %v900 = vadd.f32 %v714, %v860
        %v901 = vadd.f32 %v715, %v861
        %v902 = vadd.f32 %v716, %v862
        %v903 = vadd.f32 %v717, %v863
        %v904 = vadd.f32 %v718, %v864
        %v905 = vadd.f32 %v719, %v865
        %v906 = vadd.f32 %v720, %v866
        %v907 = vadd.f32 %v721, %v867
        %v908 = vadd.f32 %v722, %v868
        %v909 = vadd.f32 %v723, %v869
        %v910 = vadd.f32 %v724, %v870
        %v911 = vadd.f32 %v725, %v871
        %v912 = vadd.f32 %v726, %v872
        %v913 = vadd.f32 %v727, %v873
        %v914 = vadd.f32 %v728, %v874
        %v915 = vadd.f32 %v729, %v875
        %v916 = vadd.f32 %v730, %v876
        %v917 = vadd.f32 %v731, %v877
        %v918 = vadd.f32 %v732, %v878
        %v919 = vadd.f32 %v733, %v879
        %v920 = vadd.f32 %v734, %v880
        %v921 = vadd.f32 %v735, %v881
        %v922 = vadd.f32 %v736, %v882
        %v923 = vadd.f32 %v737, %v883
        %v924 = vadd.f32 %v738, %v884
        %v925 = vadd.f32 %v739, %v885
        %v926 = vadd.f32 %v740, %v886
        %v927 = vadd.f32 %v741, %v887
        %v928 = vadd.f32 %v742, %v888
        %v929 = vld [vmem:[%s2] sm:$0xff]
        %v930 = vld [vmem:[%s2 + $0x8] sm:$0xff]
        %v931 = vld [vmem:[%s2 + $0x10] sm:$0xff]
        %v932 = vld [vmem:[%s2 + $0x18] sm:$0xff]
        %934 = vset.pattern.permute.xlu0 0
        %935 = vperm.xlu0 %934, %v929
        %v936 = vpop.permute.xlu0 %935
        %939 = vset.pattern.permute.xlu0 0
        %940 = vperm.xlu0 %939, %v930
        %v941 = vpop.permute.xlu0 %940
        %944 = vset.pattern.permute.xlu0 0
        %945 = vperm.xlu0 %944, %v931
        %v946 = vpop.permute.xlu0 %945
        %949 = vset.pattern.permute.xlu0 0
        %950 = vperm.xlu0 %949, %v932
        %v951 = vpop.permute.xlu0 %950
        %v953 = vadd.f32 %v889, %v936
        %v954 = vadd.f32 %v890, %v936
        %v955 = vadd.f32 %v891, %v936
        %v956 = vadd.f32 %v892, %v936
        %v957 = vadd.f32 %v893, %v936
        %v958 = vadd.f32 %v894, %v936
        %v959 = vadd.f32 %v895, %v936
        %v960 = vadd.f32 %v896, %v936
        %v961 = vadd.f32 %v897, %v936
        %v962 = vadd.f32 %v898, %v936
        %v963 = vadd.f32 %v899, %v941
        %v964 = vadd.f32 %v900, %v941
        %v965 = vadd.f32 %v901, %v941
        %v966 = vadd.f32 %v902, %v941
        %v967 = vadd.f32 %v903, %v941
        %v968 = vadd.f32 %v904, %v941
        %v969 = vadd.f32 %v905, %v941
        %v970 = vadd.f32 %v906, %v941
        %v971 = vadd.f32 %v907, %v941
        %v972 = vadd.f32 %v908, %v941
        %v973 = vadd.f32 %v909, %v946
        %v974 = vadd.f32 %v910, %v946
        %v975 = vadd.f32 %v911, %v946
        %v976 = vadd.f32 %v912, %v946
        %v977 = vadd.f32 %v913, %v946
        %v978 = vadd.f32 %v914, %v946
        %v979 = vadd.f32 %v915, %v946
        %v980 = vadd.f32 %v916, %v946
        %v981 = vadd.f32 %v917, %v946
        %v982 = vadd.f32 %v918, %v946
        %v983 = vadd.f32 %v919, %v951
        %v984 = vadd.f32 %v920, %v951
        %v985 = vadd.f32 %v921, %v951
        %v986 = vadd.f32 %v922, %v951
        %v987 = vadd.f32 %v923, %v951
        %v988 = vadd.f32 %v924, %v951
        %v989 = vadd.f32 %v925, %v951
        %v990 = vadd.f32 %v926, %v951
        %v991 = vadd.f32 %v927, %v951
        %v992 = vadd.f32 %v928, %v951
        %v993 = vtanh.pop %v953
        %v994 = vtanh.pop %v954
        %v995 = vtanh.pop %v955
        %v996 = vtanh.pop %v956
        %v997 = vtanh.pop %v957
        %v998 = vtanh.pop %v958
        %v999 = vtanh.pop %v959
        %v1000 = vtanh.pop %v960
        %v1001 = vtanh.pop %v961
        %v1002 = vtanh.pop %v962
        %v1003 = vtanh.pop %v963
        %v1004 = vtanh.pop %v964
        %v1005 = vtanh.pop %v965
        %v1006 = vtanh.pop %v966
        %v1007 = vtanh.pop %v967
        %v1008 = vtanh.pop %v968
        %v1009 = vtanh.pop %v969
        %v1010 = vtanh.pop %v970
        %v1011 = vtanh.pop %v971
        %v1012 = vtanh.pop %v972
        %v1013 = vtanh.pop %v973
        %v1014 = vtanh.pop %v974
        %v1015 = vtanh.pop %v975
        %v1016 = vtanh.pop %v976
        %v1017 = vtanh.pop %v977
        %v1018 = vtanh.pop %v978
        %v1019 = vtanh.pop %v979
        %v1020 = vtanh.pop %v980
        %v1021 = vtanh.pop %v981
        %v1022 = vtanh.pop %v982
        %v1023 = vtanh.pop %v983
        %v1024 = vtanh.pop %v984
        %v1025 = vtanh.pop %v985
        %v1026 = vtanh.pop %v986
        %v1027 = vtanh.pop %v987
        %v1028 = vtanh.pop %v988
        %v1029 = vtanh.pop %v989
        %v1030 = vtanh.pop %v990
        %v1031 = vtanh.pop %v991
        %v1032 = vtanh.pop %v992
        %v1033 = vld [vmem:[%s3] sm:$0xff]
        %v1034 = vld [vmem:[%s3 + $0x8] sm:$0xff]
        %v1035 = vld [vmem:[%s3 + $0x10] sm:$0xff]
        %v1036 = vld [vmem:[%s3 + $0x18] sm:$0xff]
        %v1037 = vld [vmem:[%s4] sm:$0xff]
        %v1038 = vld [vmem:[%s4 + $0x8] sm:$0xff]
        %v1039 = vld [vmem:[%s4 + $0x10] sm:$0xff]
        %v1040 = vld [vmem:[%s4 + $0x18] sm:$0xff]
        %1042 = vset.pattern.permute.xlu0 0
        %1043 = vperm.xlu0 %1042, %v1037
        %v1044 = vpop.permute.xlu0 %1043
        %1047 = vset.pattern.permute.xlu0 0
        %1048 = vperm.xlu0 %1047, %v1038
        %v1049 = vpop.permute.xlu0 %1048
        %1052 = vset.pattern.permute.xlu0 0
        %1053 = vperm.xlu0 %1052, %v1039
        %v1054 = vpop.permute.xlu0 %1053
        %1057 = vset.pattern.permute.xlu0 0
        %1058 = vperm.xlu0 %1057, %v1040
        %v1059 = vpop.permute.xlu0 %1058
        %vm1061 = vcmask 261120
        %v1063 = vsel %vm1061, %v1033, 0
        %v1066 = vsel %vm1061, %v1034, 0
        %v1069 = vsel %vm1061, %v1035, 0
        %v1072 = vsel %vm1061, %v1036, 0
        %1074 = vmatprep.subr.mxu0 %v994
        %1075 = vmatpush1.msra.mxu0 %v993
        %1076 = vmatprep.subr.mxu0 %v1004
        %1077 = vmatpush1.msra.mxu0 %v1003
        %1078 = vmatprep.subr.mxu0 %v1014
        %1079 = vmatpush1.msra.mxu0 %v1013
        %1080 = vmatprep.subr.mxu0 %v1024
        %1081 = vmatpush1.msra.mxu0 %v1023
        %1082 = vmatprep.subr.mxu0 0.0
        %1083 = vmatpush1.msra.mxu0 0.0
        %1084 = vmatprep.subr.mxu0 0.0
        %1085 = vmatpush1.msra.mxu0 0.0
        %1086 = vmatprep.subr.mxu0 0.0
        %1087 = vmatpush1.msra.mxu0 0.0
        %1088 = vmatprep.subr.mxu0 0.0
        %1089 = vmatpush1.msra.mxu0 0.0
        %1090 = vmatprep.subr.mxu0 0.0
        %1091 = vmatpush1.msra.mxu0 0.0
        %1092 = vmatprep.subr.mxu0 0.0
        %1093 = vmatpush1.msra.mxu0 0.0
        %1094 = vmatprep.subr.mxu0 0.0
        %1095 = vmatpush1.msra.mxu0 0.0
        %1096 = vmatprep.subr.mxu0 0.0
        %1097 = vmatpush1.msra.mxu0 0.0
        %1098 = vmatprep.subr.mxu0 0.0
        %1099 = vmatpush1.msra.mxu0 0.0
        %1100 = vmatprep.subr.mxu0 0.0
        %1101 = vmatpush1.msra.mxu0 0.0
        %1102 = vmatprep.subr.mxu0 0.0
        %1103 = vmatpush1.msra.mxu0 0.0
        %1104 = vmatprep.subr.mxu0 0.0
        %1105 = vmatpush1.msra.mxu0 0.0
        %1106 = vmatprep.subr.mxu0 0.0
        %1107 = vmatpush1.msra.mxu0 0.0
        %1108 = vmatprep.subr.mxu0 0.0
        %1109 = vmatpush1.msra.mxu0 0.0
        %1110 = vmatprep.subr.mxu0 0.0
        %1111 = vmatpush1.msra.mxu0 0.0
        %1112 = vmatprep.subr.mxu0 0.0
        %1113 = vmatpush1.msra.mxu0 0.0
        %1114 = vmatprep.subr.mxu0 0.0
        %1115 = vmatpush1.msra.mxu0 0.0
        %1116 = vmatprep.subr.mxu0 0.0
        %1117 = vmatpush1.msra.mxu0 0.0
        %1118 = vmatprep.subr.mxu0 0.0
        %1119 = vmatpush1.msra.mxu0 0.0
        %1120 = vmatprep.subr.mxu0 0.0
        %1121 = vmatpush1.msra.mxu0 0.0
        %1122 = vmatprep.subr.mxu0 0.0
        %1123 = vmatpush1.msra.mxu0 0.0
        %1124 = vmatprep.subr.mxu0 0.0
        %1125 = vmatpush1.msra.mxu0 0.0
        %1126 = vmatprep.subr.mxu0 0.0
        %1127 = vmatpush1.msra.mxu0 0.0
        %1128 = vmatprep.subr.mxu0 0.0
        %1129 = vmatpush1.msra.mxu0 0.0
        %1130 = vmatprep.subr.mxu0 0.0
        %1131 = vmatpush1.msra.mxu0 0.0
        %1132 = vmatprep.subr.mxu0 0.0
        %1133 = vmatpush1.msra.mxu0 0.0
        %1134 = vmatprep.subr.mxu0 0.0
        %1135 = vmatpush1.msra.mxu0 0.0
        %1136 = vmatprep.subr.mxu0 0.0
        %1137 = vmatpush1.msra.mxu0 0.0
        %1138 = vmatprep.mubr.f32.mxu0 0.0
        %1139 = vmatmul.mubr.f32.gmra.mrb[0].mxu0 %v1063
        %v1140 = vpop.f32.mrb[0].mxu0
        %v1141 = vadd.f32 %v1044, %v1140
        %v1142 = vpop.f32.mrb[0].mxu0
        %v1143 = vadd.f32 %v1044, %v1142
        %1144 = vmatprep.mubr.f32.mxu0 0.0
        %1145 = vmatmul.mubr.f32.gmra.mrb[0].mxu0 %v1066
        %v1146 = vpop.f32.mrb[0].mxu0
        %v1147 = vadd.f32 %v1049, %v1146
        %v1148 = vpop.f32.mrb[0].mxu0
        %v1149 = vadd.f32 %v1049, %v1148
        %1150 = vmatprep.mubr.f32.mxu0 0.0
        %1151 = vmatmul.mubr.f32.gmra.mrb[0].mxu0 %v1069
        %v1152 = vpop.f32.mrb[0].mxu0
        %v1153 = vadd.f32 %v1054, %v1152
        %v1154 = vpop.f32.mrb[0].mxu0
        %v1155 = vadd.f32 %v1054, %v1154
        %1156 = vmatprep.mubr.f32.mxu0 0.0
        %1157 = vmatmul.mubr.f32.gmra.mrb[0].mxu0 %v1072
        %v1158 = vpop.f32.mrb[0].mxu0
        %v1159 = vadd.f32 %v1059, %v1158
        %v1160 = vpop.f32.mrb[0].mxu0
        %v1161 = vadd.f32 %v1059, %v1160
        %1162 = vdwg.mxu0
        %1163 = vmatprep.subr.mxu0 %v996
        %1164 = vmatpush1.msra.mxu0 %v995
        %1165 = vmatprep.subr.mxu0 %v1006
        %1166 = vmatpush1.msra.mxu0 %v1005
        %1167 = vmatprep.subr.mxu0 %v1016
        %1168 = vmatpush1.msra.mxu0 %v1015
        %1169 = vmatprep.subr.mxu0 %v1026
        %1170 = vmatpush1.msra.mxu0 %v1025
        %1171 = vmatprep.subr.mxu0 0.0
        %1172 = vmatpush1.msra.mxu0 0.0
        %1173 = vmatprep.subr.mxu0 0.0
        %1174 = vmatpush1.msra.mxu0 0.0
        %1175 = vmatprep.subr.mxu0 0.0
        %1176 = vmatpush1.msra.mxu0 0.0
        %1177 = vmatprep.subr.mxu0 0.0
        %1178 = vmatpush1.msra.mxu0 0.0
        %1179 = vmatprep.subr.mxu0 0.0
        %1180 = vmatpush1.msra.mxu0 0.0
        %1181 = vmatprep.subr.mxu0 0.0
        %1182 = vmatpush1.msra.mxu0 0.0
        %1183 = vmatprep.subr.mxu0 0.0
        %1184 = vmatpush1.msra.mxu0 0.0
        %1185 = vmatprep.subr.mxu0 0.0
        %1186 = vmatpush1.msra.mxu0 0.0
        %1187 = vmatprep.subr.mxu0 0.0
        %1188 = vmatpush1.msra.mxu0 0.0
        %1189 = vmatprep.subr.mxu0 0.0
        %1190 = vmatpush1.msra.mxu0 0.0
        %1191 = vmatprep.subr.mxu0 0.0
        %1192 = vmatpush1.msra.mxu0 0.0
        %1193 = vmatprep.subr.mxu0 0.0
        %1194 = vmatpush1.msra.mxu0 0.0
        %1195 = vmatprep.subr.mxu0 0.0
        %1196 = vmatpush1.msra.mxu0 0.0
        %1197 = vmatprep.subr.mxu0 0.0
        %1198 = vmatpush1.msra.mxu0 0.0
        %1199 = vmatprep.subr.mxu0 0.0
        %1200 = vmatpush1.msra.mxu0 0.0
        %1201 = vmatprep.subr.mxu0 0.0
        %1202 = vmatpush1.msra.mxu0 0.0
        %1203 = vmatprep.subr.mxu0 0.0
        %1204 = vmatpush1.msra.mxu0 0.0
        %1205 = vmatprep.subr.mxu0 0.0
        %1206 = vmatpush1.msra.mxu0 0.0
        %1207 = vmatprep.subr.mxu0 0.0
        %1208 = vmatpush1.msra.mxu0 0.0
        %1209 = vmatprep.subr.mxu0 0.0
        %1210 = vmatpush1.msra.mxu0 0.0
        %1211 = vmatprep.subr.mxu0 0.0
        %1212 = vmatpush1.msra.mxu0 0.0
        %1213 = vmatprep.subr.mxu0 0.0
        %1214 = vmatpush1.msra.mxu0 0.0
        %1215 = vmatprep.subr.mxu0 0.0
        %1216 = vmatpush1.msra.mxu0 0.0
        %1217 = vmatprep.subr.mxu0 0.0
        %1218 = vmatpush1.msra.mxu0 0.0
        %1219 = vmatprep.subr.mxu0 0.0
        %1220 = vmatpush1.msra.mxu0 0.0
        %1221 = vmatprep.subr.mxu0 0.0
        %1222 = vmatpush1.msra.mxu0 0.0
        %1223 = vmatprep.subr.mxu0 0.0
        %1224 = vmatpush1.msra.mxu0 0.0
        %1225 = vmatprep.subr.mxu0 0.0
        %1226 = vmatpush1.msra.mxu0 0.0
        %1227 = vmatprep.mubr.f32.mxu0 0.0
        %1228 = vmatmul.mubr.f32.gmra.mrb[0].mxu0 %v1063
        %v1229 = vpop.f32.mrb[0].mxu0
        %v1230 = vadd.f32 %v1044, %v1229
        %v1231 = vpop.f32.mrb[0].mxu0
        %v1232 = vadd.f32 %v1044, %v1231
        %1233 = vmatprep.mubr.f32.mxu0 0.0
        %1234 = vmatmul.mubr.f32.gmra.mrb[0].mxu0 %v1066
        %v1235 = vpop.f32.mrb[0].mxu0
        %v1236 = vadd.f32 %v1049, %v1235
        %v1237 = vpop.f32.mrb[0].mxu0
        %v1238 = vadd.f32 %v1049, %v1237
        %1239 = vmatprep.mubr.f32.mxu0 0.0
        %1240 = vmatmul.mubr.f32.gmra.mrb[0].mxu0 %v1069
        %v1241 = vpop.f32.mrb[0].mxu0
        %v1242 = vadd.f32 %v1054, %v1241
        %v1243 = vpop.f32.mrb[0].mxu0
        %v1244 = vadd.f32 %v1054, %v1243
        %1245 = vmatprep.mubr.f32.mxu0 0.0
        %1246 = vmatmul.mubr.f32.gmra.mrb[0].mxu0 %v1072
        %v1247 = vpop.f32.mrb[0].mxu0
        %v1248 = vadd.f32 %v1059, %v1247
        %v1249 = vpop.f32.mrb[0].mxu0
        %v1250 = vadd.f32 %v1059, %v1249
        %1251 = vdwg.mxu0
        %1252 = vmatprep.subr.mxu0 %v998
        %1253 = vmatpush1.msra.mxu0 %v997
        %1254 = vmatprep.subr.mxu0 %v1008
        %1255 = vmatpush1.msra.mxu0 %v1007
        %1256 = vmatprep.subr.mxu0 %v1018
        %1257 = vmatpush1.msra.mxu0 %v1017
        %1258 = vmatprep.subr.mxu0 %v1028
        %1259 = vmatpush1.msra.mxu0 %v1027
        %1260 = vmatprep.subr.mxu0 0.0
        %1261 = vmatpush1.msra.mxu0 0.0
        %1262 = vmatprep.subr.mxu0 0.0
        %1263 = vmatpush1.msra.mxu0 0.0
        %1264 = vmatprep.subr.mxu0 0.0
        %1265 = vmatpush1.msra.mxu0 0.0
        %1266 = vmatprep.subr.mxu0 0.0
        %1267 = vmatpush1.msra.mxu0 0.0
        %1268 = vmatprep.subr.mxu0 0.0
        %1269 = vmatpush1.msra.mxu0 0.0
        %1270 = vmatprep.subr.mxu0 0.0
        %1271 = vmatpush1.msra.mxu0 0.0
        %1272 = vmatprep.subr.mxu0 0.0
        %1273 = vmatpush1.msra.mxu0 0.0
        %1274 = vmatprep.subr.mxu0 0.0
        %1275 = vmatpush1.msra.mxu0 0.0
        %1276 = vmatprep.subr.mxu0 0.0
        %1277 = vmatpush1.msra.mxu0 0.0
        %1278 = vmatprep.subr.mxu0 0.0
        %1279 = vmatpush1.msra.mxu0 0.0
        %1280 = vmatprep.subr.mxu0 0.0
        %1281 = vmatpush1.msra.mxu0 0.0
        %1282 = vmatprep.subr.mxu0 0.0
        %1283 = vmatpush1.msra.mxu0 0.0
        %1284 = vmatprep.subr.mxu0 0.0
        %1285 = vmatpush1.msra.mxu0 0.0
        %1286 = vmatprep.subr.mxu0 0.0
        %1287 = vmatpush1.msra.mxu0 0.0
        %1288 = vmatprep.subr.mxu0 0.0
        %1289 = vmatpush1.msra.mxu0 0.0
        %1290 = vmatprep.subr.mxu0 0.0
        %1291 = vmatpush1.msra.mxu0 0.0
        %1292 = vmatprep.subr.mxu0 0.0
        %1293 = vmatpush1.msra.mxu0 0.0
        %1294 = vmatprep.subr.mxu0 0.0
        %1295 = vmatpush1.msra.mxu0 0.0
        %1296 = vmatprep.subr.mxu0 0.0
        %1297 = vmatpush1.msra.mxu0 0.0
        %1298 = vmatprep.subr.mxu0 0.0
        %1299 = vmatpush1.msra.mxu0 0.0
        %1300 = vmatprep.subr.mxu0 0.0
        %1301 = vmatpush1.msra.mxu0 0.0
        %1302 = vmatprep.subr.mxu0 0.0
        %1303 = vmatpush1.msra.mxu0 0.0
        %1304 = vmatprep.subr.mxu0 0.0
        %1305 = vmatpush1.msra.mxu0 0.0
        %1306 = vmatprep.subr.mxu0 0.0
        %1307 = vmatpush1.msra.mxu0 0.0
        %1308 = vmatprep.subr.mxu0 0.0
        %1309 = vmatpush1.msra.mxu0 0.0
        %1310 = vmatprep.subr.mxu0 0.0
        %1311 = vmatpush1.msra.mxu0 0.0
        %1312 = vmatprep.subr.mxu0 0.0
        %1313 = vmatpush1.msra.mxu0 0.0
        %1314 = vmatprep.subr.mxu0 0.0
        %1315 = vmatpush1.msra.mxu0 0.0
        %1316 = vmatprep.mubr.f32.mxu0 0.0
        %1317 = vmatmul.mubr.f32.gmra.mrb[0].mxu0 %v1063
        %v1318 = vpop.f32.mrb[0].mxu0
        %v1319 = vadd.f32 %v1044, %v1318
        %v1320 = vpop.f32.mrb[0].mxu0
        %v1321 = vadd.f32 %v1044, %v1320
        %1322 = vmatprep.mubr.f32.mxu0 0.0
        %1323 = vmatmul.mubr.f32.gmra.mrb[0].mxu0 %v1066
        %v1324 = vpop.f32.mrb[0].mxu0
        %v1325 = vadd.f32 %v1049, %v1324
        %v1326 = vpop.f32.mrb[0].mxu0
        %v1327 = vadd.f32 %v1049, %v1326
        %1328 = vmatprep.mubr.f32.mxu0 0.0
        %1329 = vmatmul.mubr.f32.gmra.mrb[0].mxu0 %v1069
        %v1330 = vpop.f32.mrb[0].mxu0
        %v1331 = vadd.f32 %v1054, %v1330
        %v1332 = vpop.f32.mrb[0].mxu0
        %v1333 = vadd.f32 %v1054, %v1332
        %1334 = vmatprep.mubr.f32.mxu0 0.0
        %1335 = vmatmul.mubr.f32.gmra.mrb[0].mxu0 %v1072
        %v1336 = vpop.f32.mrb[0].mxu0
        %v1337 = vadd.f32 %v1059, %v1336
        %v1338 = vpop.f32.mrb[0].mxu0
        %v1339 = vadd.f32 %v1059, %v1338
        %1340 = vdwg.mxu0
        %1341 = vmatprep.subr.mxu0 %v1000
        %1342 = vmatpush1.msra.mxu0 %v999
        %1343 = vmatprep.subr.mxu0 %v1010
        %1344 = vmatpush1.msra.mxu0 %v1009
        %1345 = vmatprep.subr.mxu0 %v1020
        %1346 = vmatpush1.msra.mxu0 %v1019
        %1347 = vmatprep.subr.mxu0 %v1030
        %1348 = vmatpush1.msra.mxu0 %v1029
        %1349 = vmatprep.subr.mxu0 0.0
        %1350 = vmatpush1.msra.mxu0 0.0
        %1351 = vmatprep.subr.mxu0 0.0
        %1352 = vmatpush1.msra.mxu0 0.0
        %1353 = vmatprep.subr.mxu0 0.0
        %1354 = vmatpush1.msra.mxu0 0.0
        %1355 = vmatprep.subr.mxu0 0.0
        %1356 = vmatpush1.msra.mxu0 0.0
        %1357 = vmatprep.subr.mxu0 0.0
        %1358 = vmatpush1.msra.mxu0 0.0
        %1359 = vmatprep.subr.mxu0 0.0
        %1360 = vmatpush1.msra.mxu0 0.0
        %1361 = vmatprep.subr.mxu0 0.0
        %1362 = vmatpush1.msra.mxu0 0.0
        %1363 = vmatprep.subr.mxu0 0.0
        %1364 = vmatpush1.msra.mxu0 0.0
        %1365 = vmatprep.subr.mxu0 0.0
        %1366 = vmatpush1.msra.mxu0 0.0
        %1367 = vmatprep.subr.mxu0 0.0
        %1368 = vmatpush1.msra.mxu0 0.0
        %1369 = vmatprep.subr.mxu0 0.0
        %1370 = vmatpush1.msra.mxu0 0.0
        %1371 = vmatprep.subr.mxu0 0.0
        %1372 = vmatpush1.msra.mxu0 0.0
        %1373 = vmatprep.subr.mxu0 0.0
        %1374 = vmatpush1.msra.mxu0 0.0
        %1375 = vmatprep.subr.mxu0 0.0
        %1376 = vmatpush1.msra.mxu0 0.0
        %1377 = vmatprep.subr.mxu0 0.0
        %1378 = vmatpush1.msra.mxu0 0.0
        %1379 = vmatprep.subr.mxu0 0.0
        %1380 = vmatpush1.msra.mxu0 0.0
        %1381 = vmatprep.subr.mxu0 0.0
        %1382 = vmatpush1.msra.mxu0 0.0
        %1383 = vmatprep.subr.mxu0 0.0
        %1384 = vmatpush1.msra.mxu0 0.0
        %1385 = vmatprep.subr.mxu0 0.0
        %1386 = vmatpush1.msra.mxu0 0.0
        %1387 = vmatprep.subr.mxu0 0.0
        %1388 = vmatpush1.msra.mxu0 0.0
        %1389 = vmatprep.subr.mxu0 0.0
        %1390 = vmatpush1.msra.mxu0 0.0
        %1391 = vmatprep.subr.mxu0 0.0
        %1392 = vmatpush1.msra.mxu0 0.0
        %1393 = vmatprep.subr.mxu0 0.0
        %1394 = vmatpush1.msra.mxu0 0.0
        %1395 = vmatprep.subr.mxu0 0.0
        %1396 = vmatpush1.msra.mxu0 0.0
        %1397 = vmatprep.subr.mxu0 0.0
        %1398 = vmatpush1.msra.mxu0 0.0
        %1399 = vmatprep.subr.mxu0 0.0
        %1400 = vmatpush1.msra.mxu0 0.0
        %1401 = vmatprep.subr.mxu0 0.0
        %1402 = vmatpush1.msra.mxu0 0.0
        %1403 = vmatprep.subr.mxu0 0.0
        %1404 = vmatpush1.msra.mxu0 0.0
        %1405 = vmatprep.mubr.f32.mxu0 0.0
        %1406 = vmatmul.mubr.f32.gmra.mrb[0].mxu0 %v1063
        %v1407 = vpop.f32.mrb[0].mxu0
        %v1408 = vadd.f32 %v1044, %v1407
        %v1409 = vpop.f32.mrb[0].mxu0
        %v1410 = vadd.f32 %v1044, %v1409
        %1411 = vmatprep.mubr.f32.mxu0 0.0
        %1412 = vmatmul.mubr.f32.gmra.mrb[0].mxu0 %v1066
        %v1413 = vpop.f32.mrb[0].mxu0
        %v1414 = vadd.f32 %v1049, %v1413
        %v1415 = vpop.f32.mrb[0].mxu0
        %v1416 = vadd.f32 %v1049, %v1415
        %1417 = vmatprep.mubr.f32.mxu0 0.0
        %1418 = vmatmul.mubr.f32.gmra.mrb[0].mxu0 %v1069
        %v1419 = vpop.f32.mrb[0].mxu0
        %v1420 = vadd.f32 %v1054, %v1419
        %v1421 = vpop.f32.mrb[0].mxu0
        %v1422 = vadd.f32 %v1054, %v1421
        %1423 = vmatprep.mubr.f32.mxu0 0.0
        %1424 = vmatmul.mubr.f32.gmra.mrb[0].mxu0 %v1072
        %v1425 = vpop.f32.mrb[0].mxu0
        %v1426 = vadd.f32 %v1059, %v1425
        %v1427 = vpop.f32.mrb[0].mxu0
        %v1428 = vadd.f32 %v1059, %v1427
        %1429 = vdwg.mxu0
        %1430 = vmatprep.subr.mxu0 %v1002
        %1431 = vmatpush1.msra.mxu0 %v1001
        %1432 = vmatprep.subr.mxu0 %v1012
        %1433 = vmatpush1.msra.mxu0 %v1011
        %1434 = vmatprep.subr.mxu0 %v1022
        %1435 = vmatpush1.msra.mxu0 %v1021
        %1436 = vmatprep.subr.mxu0 %v1032
        %1437 = vmatpush1.msra.mxu0 %v1031
        %1438 = vmatprep.subr.mxu0 0.0
        %1439 = vmatpush1.msra.mxu0 0.0
        %1440 = vmatprep.subr.mxu0 0.0
        %1441 = vmatpush1.msra.mxu0 0.0
        %1442 = vmatprep.subr.mxu0 0.0
        %1443 = vmatpush1.msra.mxu0 0.0
        %1444 = vmatprep.subr.mxu0 0.0
        %1445 = vmatpush1.msra.mxu0 0.0
        %1446 = vmatprep.subr.mxu0 0.0
        %1447 = vmatpush1.msra.mxu0 0.0
        %1448 = vmatprep.subr.mxu0 0.0
        %1449 = vmatpush1.msra.mxu0 0.0
        %1450 = vmatprep.subr.mxu0 0.0
        %1451 = vmatpush1.msra.mxu0 0.0
        %1452 = vmatprep.subr.mxu0 0.0
        %1453 = vmatpush1.msra.mxu0 0.0
        %1454 = vmatprep.subr.mxu0 0.0
        %1455 = vmatpush1.msra.mxu0 0.0
        %1456 = vmatprep.subr.mxu0 0.0
        %1457 = vmatpush1.msra.mxu0 0.0
        %1458 = vmatprep.subr.mxu0 0.0
        %1459 = vmatpush1.msra.mxu0 0.0
        %1460 = vmatprep.subr.mxu0 0.0
        %1461 = vmatpush1.msra.mxu0 0.0
        %1462 = vmatprep.subr.mxu0 0.0
        %1463 = vmatpush1.msra.mxu0 0.0
        %1464 = vmatprep.subr.mxu0 0.0
        %1465 = vmatpush1.msra.mxu0 0.0
        %1466 = vmatprep.subr.mxu0 0.0
        %1467 = vmatpush1.msra.mxu0 0.0
        %1468 = vmatprep.subr.mxu0 0.0
        %1469 = vmatpush1.msra.mxu0 0.0
        %1470 = vmatprep.subr.mxu0 0.0
        %1471 = vmatpush1.msra.mxu0 0.0
        %1472 = vmatprep.subr.mxu0 0.0
        %1473 = vmatpush1.msra.mxu0 0.0
        %1474 = vmatprep.subr.mxu0 0.0
        %1475 = vmatpush1.msra.mxu0 0.0
        %1476 = vmatprep.subr.mxu0 0.0
        %1477 = vmatpush1.msra.mxu0 0.0
        %1478 = vmatprep.subr.mxu0 0.0
        %1479 = vmatpush1.msra.mxu0 0.0
        %1480 = vmatprep.subr.mxu0 0.0
        %1481 = vmatpush1.msra.mxu0 0.0
        %1482 = vmatprep.subr.mxu0 0.0
        %1483 = vmatpush1.msra.mxu0 0.0
        %1484 = vmatprep.subr.mxu0 0.0
        %1485 = vmatpush1.msra.mxu0 0.0
        %1486 = vmatprep.subr.mxu0 0.0
        %1487 = vmatpush1.msra.mxu0 0.0
        %1488 = vmatprep.subr.mxu0 0.0
        %1489 = vmatpush1.msra.mxu0 0.0
        %1490 = vmatprep.subr.mxu0 0.0
        %1491 = vmatpush1.msra.mxu0 0.0
        %1492 = vmatprep.subr.mxu0 0.0
        %1493 = vmatpush1.msra.mxu0 0.0
        %1494 = vmatprep.mubr.f32.mxu0 0.0
        %1495 = vmatmul.mubr.f32.gmra.mrb[0].mxu0 %v1063
        %v1496 = vpop.f32.mrb[0].mxu0
        %v1497 = vadd.f32 %v1044, %v1496
        %v1498 = vpop.f32.mrb[0].mxu0
        %v1499 = vadd.f32 %v1044, %v1498
        %1500 = vmatprep.mubr.f32.mxu0 0.0
        %1501 = vmatmul.mubr.f32.gmra.mrb[0].mxu0 %v1066
        %v1502 = vpop.f32.mrb[0].mxu0
        %v1503 = vadd.f32 %v1049, %v1502
        %v1504 = vpop.f32.mrb[0].mxu0
        %v1505 = vadd.f32 %v1049, %v1504
        %1506 = vmatprep.mubr.f32.mxu0 0.0
        %1507 = vmatmul.mubr.f32.gmra.mrb[0].mxu0 %v1069
        %v1508 = vpop.f32.mrb[0].mxu0
        %v1509 = vadd.f32 %v1054, %v1508
        %v1510 = vpop.f32.mrb[0].mxu0
        %v1511 = vadd.f32 %v1054, %v1510
        %1512 = vmatprep.mubr.f32.mxu0 0.0
        %1513 = vmatmul.mubr.f32.gmra.mrb[0].mxu0 %v1072
        %v1514 = vpop.f32.mrb[0].mxu0
        %v1515 = vadd.f32 %v1059, %v1514
        %v1516 = vpop.f32.mrb[0].mxu0
        %v1517 = vadd.f32 %v1059, %v1516
        %1518 = vdwg.mxu0
        %v1519 = vtanh.pop %v1141
        %v1520 = vtanh.pop %v1143
        %v1521 = vtanh.pop %v1230
        %v1522 = vtanh.pop %v1232
        %v1523 = vtanh.pop %v1319
        %v1524 = vtanh.pop %v1321
        %v1525 = vtanh.pop %v1408
        %v1526 = vtanh.pop %v1410
        %v1527 = vtanh.pop %v1497
        %v1528 = vtanh.pop %v1499
        %v1529 = vtanh.pop %v1147
        %v1530 = vtanh.pop %v1149
        %v1531 = vtanh.pop %v1236
        %v1532 = vtanh.pop %v1238
        %v1533 = vtanh.pop %v1325
        %v1534 = vtanh.pop %v1327
        %v1535 = vtanh.pop %v1414
        %v1536 = vtanh.pop %v1416
        %v1537 = vtanh.pop %v1503
        %v1538 = vtanh.pop %v1505
        %v1539 = vtanh.pop %v1153
        %v1540 = vtanh.pop %v1155
        %v1541 = vtanh.pop %v1242
        %v1542 = vtanh.pop %v1244
        %v1543 = vtanh.pop %v1331
        %v1544 = vtanh.pop %v1333
        %v1545 = vtanh.pop %v1420
        %v1546 = vtanh.pop %v1422
        %v1547 = vtanh.pop %v1509
        %v1548 = vtanh.pop %v1511
        %v1549 = vtanh.pop %v1159
        %v1550 = vtanh.pop %v1161
        %v1551 = vtanh.pop %v1248
        %v1552 = vtanh.pop %v1250
        %v1553 = vtanh.pop %v1337
        %v1554 = vtanh.pop %v1339
        %v1555 = vtanh.pop %v1426
        %v1556 = vtanh.pop %v1428
        %v1557 = vtanh.pop %v1515
        %v1558 = vtanh.pop %v1517
        %v1559 = vld [vmem:[%s5] sm:$0xff]
        %v1560 = vld [vmem:[%s5 + $0x8] sm:$0xff]
        %v1561 = vld [vmem:[%s5 + $0x10] sm:$0xff]
        %v1562 = vld [vmem:[%s5 + $0x18] sm:$0xff]
        %1564 = vset.pattern.permute.xlu0 0
        %1565 = vperm.xlu0 %1564, %v1559
        %v1566 = vpop.permute.xlu0 %1565
        %1569 = vset.pattern.permute.xlu0 0
        %1570 = vperm.xlu0 %1569, %v1560
        %v1571 = vpop.permute.xlu0 %1570
        %1574 = vset.pattern.permute.xlu0 0
        %1575 = vperm.xlu0 %1574, %v1561
        %v1576 = vpop.permute.xlu0 %1575
        %1579 = vset.pattern.permute.xlu0 0
        %1580 = vperm.xlu0 %1579, %v1562
        %v1581 = vpop.permute.xlu0 %1580
        %v1583 = vmul.f32 %v1519, %v1566
        %v1584 = vmul.f32 %v1520, %v1566
        %v1585 = vmul.f32 %v1521, %v1566
        %v1586 = vmul.f32 %v1522, %v1566
        %v1587 = vmul.f32 %v1523, %v1566
        %v1588 = vmul.f32 %v1524, %v1566
        %v1589 = vmul.f32 %v1525, %v1566
        %v1590 = vmul.f32 %v1526, %v1566
        %v1591 = vmul.f32 %v1527, %v1566
        %v1592 = vmul.f32 %v1528, %v1566
        %v1593 = vmul.f32 %v1529, %v1571
        %v1594 = vmul.f32 %v1530, %v1571
        %v1595 = vmul.f32 %v1531, %v1571
        %v1596 = vmul.f32 %v1532, %v1571
        %v1597 = vmul.f32 %v1533, %v1571
        %v1598 = vmul.f32 %v1534, %v1571
        %v1599 = vmul.f32 %v1535, %v1571
        %v1600 = vmul.f32 %v1536, %v1571
        %v1601 = vmul.f32 %v1537, %v1571
        %v1602 = vmul.f32 %v1538, %v1571
        %v1603 = vmul.f32 %v1539, %v1576
        %v1604 = vmul.f32 %v1540, %v1576
        %v1605 = vmul.f32 %v1541, %v1576
        %v1606 = vmul.f32 %v1542, %v1576
        %v1607 = vmul.f32 %v1543, %v1576
        %v1608 = vmul.f32 %v1544, %v1576
        %v1609 = vmul.f32 %v1545, %v1576
        %v1610 = vmul.f32 %v1546, %v1576
        %v1611 = vmul.f32 %v1547, %v1576
        %v1612 = vmul.f32 %v1548, %v1576
        %v1613 = vmul.f32 %v1549, %v1581
        %v1614 = vmul.f32 %v1550, %v1581
        %v1615 = vmul.f32 %v1551, %v1581
        %v1616 = vmul.f32 %v1552, %v1581
        %v1617 = vmul.f32 %v1553, %v1581
        %v1618 = vmul.f32 %v1554, %v1581
        %v1619 = vmul.f32 %v1555, %v1581
        %v1620 = vmul.f32 %v1556, %v1581
        %v1621 = vmul.f32 %v1557, %v1581
        %v1622 = vmul.f32 %v1558, %v1581
        %v1623 = vadd.f32 %v1583, %v1603
        %v1624 = vadd.f32 %v1584, %v1604
        %v1625 = vadd.f32 %v1585, %v1605
        %v1626 = vadd.f32 %v1586, %v1606
        %v1627 = vadd.f32 %v1587, %v1607
        %v1628 = vadd.f32 %v1588, %v1608
        %v1629 = vadd.f32 %v1589, %v1609
        %v1630 = vadd.f32 %v1590, %v1610
        %v1631 = vadd.f32 %v1591, %v1611
        %v1632 = vadd.f32 %v1592, %v1612
        %v1633 = vadd.f32 %v1593, %v1613
        %v1634 = vadd.f32 %v1594, %v1614
        %v1635 = vadd.f32 %v1595, %v1615
        %v1636 = vadd.f32 %v1596, %v1616
        %v1637 = vadd.f32 %v1597, %v1617
        %v1638 = vadd.f32 %v1598, %v1618
        %v1639 = vadd.f32 %v1599, %v1619
        %v1640 = vadd.f32 %v1600, %v1620
        %v1641 = vadd.f32 %v1601, %v1621
        %v1642 = vadd.f32 %v1602, %v1622
        %v1643 = vadd.f32 %v1623, %v1633
        %v1644 = vadd.f32 %v1624, %v1634
        %v1645 = vadd.f32 %v1625, %v1635
        %v1646 = vadd.f32 %v1626, %v1636
        %v1647 = vadd.f32 %v1627, %v1637
        %v1648 = vadd.f32 %v1628, %v1638
        %v1649 = vadd.f32 %v1629, %v1639
        %v1650 = vadd.f32 %v1630, %v1640
        %v1651 = vadd.f32 %v1631, %v1641
        %v1652 = vadd.f32 %v1632, %v1642
        %v1653 = vrot.slane %v1643, 4
        %v1654 = vadd.f32 %v1643, %v1653
        %v1655 = vrot.slane %v1654, 2
        %v1656 = vadd.f32 %v1654, %v1655
        %v1657 = vrot.slane %v1656, 1
        %v1658 = vadd.f32 %v1656, %v1657
        %v1659 = vrot.slane %v1644, 4
        %v1660 = vadd.f32 %v1644, %v1659
        %v1661 = vrot.slane %v1660, 2
        %v1662 = vadd.f32 %v1660, %v1661
        %v1663 = vrot.slane %v1662, 1
        %v1664 = vadd.f32 %v1662, %v1663
        %v1665 = vrot.slane %v1645, 4
        %v1666 = vadd.f32 %v1645, %v1665
        %v1667 = vrot.slane %v1666, 2
        %v1668 = vadd.f32 %v1666, %v1667
        %v1669 = vrot.slane %v1668, 1
        %v1670 = vadd.f32 %v1668, %v1669
        %v1671 = vrot.slane %v1646, 4
        %v1672 = vadd.f32 %v1646, %v1671
        %v1673 = vrot.slane %v1672, 2
        %v1674 = vadd.f32 %v1672, %v1673
        %v1675 = vrot.slane %v1674, 1
        %v1676 = vadd.f32 %v1674, %v1675
        %v1677 = vrot.slane %v1647, 4
        %v1678 = vadd.f32 %v1647, %v1677
        %v1679 = vrot.slane %v1678, 2
        %v1680 = vadd.f32 %v1678, %v1679
        %v1681 = vrot.slane %v1680, 1
        %v1682 = vadd.f32 %v1680, %v1681
        %v1683 = vrot.slane %v1648, 4
        %v1684 = vadd.f32 %v1648, %v1683
        %v1685 = vrot.slane %v1684, 2
        %v1686 = vadd.f32 %v1684, %v1685
        %v1687 = vrot.slane %v1686, 1
        %v1688 = vadd.f32 %v1686, %v1687
        %v1689 = vrot.slane %v1649, 4
        %v1690 = vadd.f32 %v1649, %v1689
        %v1691 = vrot.slane %v1690, 2
        %v1692 = vadd.f32 %v1690, %v1691
        %v1693 = vrot.slane %v1692, 1
        %v1694 = vadd.f32 %v1692, %v1693
        %v1695 = vrot.slane %v1650, 4
        %v1696 = vadd.f32 %v1650, %v1695
        %v1697 = vrot.slane %v1696, 2
        %v1698 = vadd.f32 %v1696, %v1697
        %v1699 = vrot.slane %v1698, 1
        %v1700 = vadd.f32 %v1698, %v1699
        %v1701 = vrot.slane %v1651, 4
        %v1702 = vadd.f32 %v1651, %v1701
        %v1703 = vrot.slane %v1702, 2
        %v1704 = vadd.f32 %v1702, %v1703
        %v1705 = vrot.slane %v1704, 1
        %v1706 = vadd.f32 %v1704, %v1705
        %v1707 = vrot.slane %v1652, 4
        %v1708 = vadd.f32 %v1652, %v1707
        %v1709 = vrot.slane %v1708, 2
        %v1710 = vadd.f32 %v1708, %v1709
        %v1711 = vrot.slane %v1710, 1
        %v1712 = vadd.f32 %v1710, %v1711
        %v1723 = vcombine.low %v1658, %v1664
        %v1724 = vcombine.low %v1670, %v1676
        %v1726 = vunpack.c.l.s4 1983009808
        %v1727 = vunpack.c.0.s8 %v1726
        %v1728 = vlaneseq
        %v1729 = vshrl.u32 %v1728, 7
        %v1730 = vsub.s32 %v1727, %v1729
        %v1731 = vrot.slane %v1723, %v1730
        %v1733 = vunpack.c.l.s4 1983009808
        %v1734 = vunpack.c.0.s8 %v1733
        %v1735 = vlaneseq
        %v1736 = vshrl.u32 %v1735, 7
        %v1737 = vsub.s32 %v1734, %v1736
        %v1738 = vrot.slane %v1724, %v1737
        %v1739 = vcombine.low %v1731, %v1738
        %v1740 = vcombine.low %v1682, %v1688
        %v1741 = vcombine.low %v1694, %v1700
        %v1743 = vunpack.c.l.s4 1983009808
        %v1744 = vunpack.c.0.s8 %v1743
        %v1745 = vlaneseq
        %v1746 = vshrl.u32 %v1745, 7
        %v1747 = vsub.s32 %v1744, %v1746
        %v1748 = vrot.slane %v1740, %v1747
        %v1750 = vunpack.c.l.s4 1983009808
        %v1751 = vunpack.c.0.s8 %v1750
        %v1752 = vlaneseq
        %v1753 = vshrl.u32 %v1752, 7
        %v1754 = vsub.s32 %v1751, %v1753
        %v1755 = vrot.slane %v1741, %v1754
        %v1756 = vcombine.low %v1748, %v1755
        %v1757 = vcombine.low %v1706, %v1712
        %v1759 = vunpack.c.l.s4 1983009808
        %v1760 = vunpack.c.0.s8 %v1759
        %v1761 = vlaneseq
        %v1762 = vshrl.u32 %v1761, 7
        %v1763 = vsub.s32 %v1760, %v1762
        %v1764 = vrot.slane %v1757, %v1763
        %v1768 = vmul.f32 %v583, %v1739
        %v1769 = vmul.f32 %v584, %v1756
        %v1770 = vmul.f32 %v585, %v1764
        %v1775 = vunpack.c.l.s4 1966171168
        %v1776 = vunpack.c.0.s8 %v1775
        %v1777 = vlaneseq
        %v1778 = vshrl.u32 %v1777, 7
        %v1779 = vsub.s32 %v1776, %v1778
        %v1780 = vrot.slane %v1768, %v1779
        %v1782 = vunpack.c.l.s4 1966171168
        %v1783 = vunpack.c.0.s8 %v1782
        %v1784 = vlaneseq
        %v1785 = vshrl.u32 %v1784, 7
        %v1786 = vsub.s32 %v1783, %v1785
        %v1787 = vrot.slane %v1769, %v1786
        %v1788 = vcombine.low %v1780, %v1787
        %v1790 = vunpack.c.l.s4 1966171168
        %v1791 = vunpack.c.0.s8 %v1790
        %v1792 = vlaneseq
        %v1793 = vshrl.u32 %v1792, 7
        %v1794 = vsub.s32 %v1791, %v1793
        %v1795 = vrot.slane %v1770, %v1794
        %1798 = vst [vmem:[%s245] sm:$0xff] %v1788
        %v1799 = vlaneseq
        %vm1800 = vcmp.ge.s32.totalorder %v1799, 0
        %vm1801 = vcmp.lt.s32.totalorder %v1799, 256
        %vm1802 = vmand %vm1800, %vm1801
        %1803 = vst.msk [vmem:[%s245 + $0x8] sm:$0x3] %vm1802, %v1795
        %s1804 = sand.u32 %s159, 1
        %s1805 = scalar_lea.sflag [#allocation3], %s1804
        %s1806 = sand.u32 %s159, 1
        %s1807 = smul.addr %s1806, 10
        %s1808 = scalar_lea.vmem [#allocation2], %s1807
        // Predicated region
        $region45: #{tpu_custom_call.1} parent=43 // pred_check
          %p1809 = pneg %p169
        $region46: #{tpu_custom_call.1} parent=43 // pred_check_branch
          %1811 = sbr.rel (%p1809) target = $region48
        $region47: #{tpu_custom_call.1} parent=43 // pred_region
          %s1812 = smul.u32 10, %s20
          %s1814 = ssub.s32 160, 160
          %1815 = vsyncadd %s1805, %s1814
          %s1816 = smul.addr %s1812, 16
          %s1817 = scalar_lea.hbm %s6, %s1816
          %s1819 = sshll.u32 %s1808, 4
          %s1820 = int_to_ptr.vmem [resolvable:$true] %s1819
          %1822 = dma.vmem_to_hbm [thread:$0]  %s1820, 160, %s1817, %s1805
        $region48: #{tpu_custom_call.1} parent=43 // pred_fallthru
          _
      $region44: #{tpu_custom_call.1} parent=5 // pred_fallthru
        _
      %p1823 = scmp.le.s32.totalorder 2, %s15
      // Predicated region
      $region49: #{tpu_custom_call.1} parent=5 // pred_check
        %p1824 = pneg %p1823
      $region50: #{tpu_custom_call.1} parent=5 // pred_check_branch
        %1826 = sbr.rel (%p1824) target = $region52
      $region51: #{tpu_custom_call.1} parent=5 // pred_region
        %s1827 = ssub.s32 %s15, 2
        // Predicated region
        $region53: #{tpu_custom_call.1} parent=51 // pred_check
          %p1828 = pneg %p175
        $region54: #{tpu_custom_call.1} parent=51 // pred_check_branch
          %1830 = sbr.rel (%p1828) target = $region56
        $region55: #{tpu_custom_call.1} parent=51 // pred_region
          %s1831 = sand.u32 %s160, 1
          %s1832 = scalar_lea.sflag [#allocation3], %s1831
          %s1833 = sand.u32 %s160, 1
          %s1834 = smul.addr %s1833, 10
          %s1835 = scalar_lea.vmem [#allocation2], %s1834
          %1836 = dma.done %s1832, 160
        $region56: #{tpu_custom_call.1} parent=51 // pred_fallthru
          _
      $region52: #{tpu_custom_call.1} parent=5 // pred_fallthru
        _
    $region6: #{tpu_custom_call.1} parent=1 // loop_footer
      %s19 = sadd.s32 1, %s15
    $region7: #{tpu_custom_call.1} parent=1 // loop_footer_branch
      %14 = sbr.rel target = $region3
    $region8: #{tpu_custom_call.1} parent=1 // loop_exit
      _
    %1837 = vsyncpa [#allocation3], 1
    %s1838 = scalar_lea.sflag [#allocation3], 1
    %1839 = vsyncpa %s1838, 1

</llo_original>
